<compile_context>
chip_gen: v5e
topology: v5e:2x2
jax: 0.10.0
libtpu: 0.0.40
codegen_flags: <defaults>
</compile_context>

<pallas_src>
import functools

import jax
import jax.numpy as jnp
from jax.experimental import pallas as pl
from jax.experimental.pallas import tpu as pltpu


def _round_up(x, m):
    return (x + m - 1) // m * m


# ---------------------------------------------------------------------------
# Pass 1: conv tile (MXU) + per-channel sum / sum-of-squares accumulated across
# all M tiles; BN fold (scale/shift) computed in-kernel on the final tile.
# ---------------------------------------------------------------------------
def _conv_stats_kernel(inv_m, eps, p_ref, w_ref, g_ref, b_ref,
                       scale_ref, shift_ref, sum_sc, sq_sc):
    i = pl.program_id(0)

    @pl.when(i == 0)
    def _init():
        sum_sc[...] = jnp.zeros_like(sum_sc)
        sq_sc[...] = jnp.zeros_like(sq_sc)
        scale_ref[...] = jnp.zeros_like(scale_ref)
        shift_ref[...] = jnp.zeros_like(shift_ref)

    # (TM, Kp) bf16 @ (Kp, Cp) bf16 -> (TM, Cp) f32 on the MXU.
    y = jnp.dot(p_ref[...], w_ref[...], preferred_element_type=jnp.float32)

    # Per-channel reductions via ones-vector matmuls: the MXU is otherwise idle
    # here, and this avoids XLU cross-sublane reduces. Padded M rows of the
    # patches are all-zero, so they contribute nothing -> no masking required.
    ones = jnp.ones((1, y.shape[0]), dtype=jnp.float32)
    sum_sc[...] += jnp.dot(ones, y, preferred_element_type=jnp.float32)
    sq_sc[...] += jnp.dot(ones, y * y, preferred_element_type=jnp.float32)

    @pl.when(i == pl.num_programs(0) - 1)
    def _finalize():
        mean = sum_sc[...] * inv_m                              # (1, Cp) f32
        var = jnp.maximum(sq_sc[...] * inv_m - mean * mean, 0.0)  # biased var, clamp
        scale = g_ref[...] * jax.lax.rsqrt(var + eps)
        scale_ref[...] = scale
        shift_ref[...] = b_ref[...] - mean * scale


# ---------------------------------------------------------------------------
# Pass 2: recompute the conv tile, apply folded BN (single FMA per element,
# f32) and LeakyReLU(0.1). Fully parallel over M tiles (megacore).
# ---------------------------------------------------------------------------
def _conv_bn_lrelu_kernel(p_ref, w_ref, scale_ref, shift_ref, o_ref):
    y = jnp.dot(p_ref[...], w_ref[...], preferred_element_type=jnp.float32)
    z = y * scale_ref[...] + shift_ref[...]          # BN folded to scale/shift
    o_ref[...] = jnp.where(z > 0, z, 0.1 * z).astype(o_ref.dtype)


def _im2col(x_nchw, kh, kw, stride, padding):
    """x: (N, C_in, H, W) -> patches (N*OH*OW, C_in*KH*KW) in (c_in, kh, kw) order."""
    n, c_in, h, w = x_nchw.shape
    oh = (h + 2 * padding - kh) // stride + 1
    ow = (w + 2 * padding - kw) // stride + 1
    xp = jnp.pad(x_nchw, ((0, 0), (0, 0), (padding, padding), (padding, padding)))
    taps = []
    for i in range(kh):
        for j in range(kw):
            taps.append(xp[:, :, i:i + (oh - 1) * stride + 1:stride,
                               j:j + (ow - 1) * stride + 1:stride])
    patches = jnp.stack(taps, axis=0)                       # (KH*KW, N, C_in, OH, OW)
    patches = jnp.transpose(patches, (1, 3, 4, 2, 0))       # (N, OH, OW, C_in, KH*KW)
    patches = patches.reshape(n * oh * ow, c_in * kh * kw)  # matches OIHW weight flatten
    return patches, oh, ow


def cnn_block_forward(x_nchw, conv_weight, bn_gamma, bn_beta,
                      stride=1, padding=1, eps=1e-5, tm=256):
    """conv_weight: (C_out, C_in, KH, KW) (PyTorch layout), gamma/beta: (C_out,)."""
    n, c_in, _, _ = x_nchw.shape
    c_out, c_in_w, kh, kw = conv_weight.shape
    assert c_in == c_in_w

    # TODO(synk): im2col is still materialized as the pallas_call input; forming the
    # KH*KW taps in-kernel from a padded NHWC ref would cut HBM read traffic ~9x.
    patches, oh, ow = _im2col(x_nchw, kh, kw, stride, padding)        # (M, K)
    m, k = patches.shape

    # Pad to lane/MXU-friendly shapes: K, C_out -> multiples of 128; M -> multiple of TM.
    # Zero padding leaves the matmul results (and the BN sums) untouched.
    kp = _round_up(k, 128)
    cp = _round_up(c_out, 128)

    vmem_limit = 32 * 1024 * 1024   # safe on v5e/v6e (128 MiB) and v7x (64 MiB)

    # Clamp TM so the pass-2 working set (bf16 patches tile + f32 output tile,
    # double-buffered, plus the resident bf16 weight tile) stays well under VMEM.
    budget = vmem_limit // 2
    fixed = 2 * kp * cp * 2                      # bf16 weights, double-buffered
    per_row = 2 * (kp * 2 + cp * 4)              # bf16 patches + f32 output, double-buffered
    tm_cap = max(8, (budget - fixed) // per_row // 8 * 8)
    tm = max(8, min(tm, tm_cap, _round_up(m, 8)))

    mp = _round_up(m, tm)
    n_tiles = mp // tm

    patches_p = jnp.pad(patches, ((0, mp - m), (0, kp - k))).astype(jnp.bfloat16)
    w_mat = conv_weight.reshape(c_out, k).T                           # (K, C_out)
    w_p = jnp.pad(w_mat, ((0, kp - k), (0, cp - c_out))).astype(jnp.bfloat16)
    gamma_p = jnp.pad(bn_gamma.astype(jnp.float32), (0, cp - c_out)).reshape(1, cp)
    beta_p = jnp.pad(bn_beta.astype(jnp.float32), (0, cp - c_out)).reshape(1, cp)

    flops_mm = 2 * mp * kp * cp

    # ---- Pass 1: batch statistics + in-kernel BN fold -> (scale, shift) ------------
    scale, shift = pl.pallas_call(
        functools.partial(_conv_stats_kernel, 1.0 / float(m), float(eps)),
        out_shape=(jax.ShapeDtypeStruct((1, cp), jnp.float32),
                   jax.ShapeDtypeStruct((1, cp), jnp.float32)),
        grid=(n_tiles,),
        in_specs=[
            pl.BlockSpec((tm, kp), lambda i: (i, 0)),
            pl.BlockSpec((kp, cp), lambda i: (0, 0)),
            pl.BlockSpec((1, cp), lambda i: (0, 0)),
            pl.BlockSpec((1, cp), lambda i: (0, 0)),
        ],
        out_specs=(
            pl.BlockSpec((1, cp), lambda i: (0, 0)),
            pl.BlockSpec((1, cp), lambda i: (0, 0)),
        ),
        scratch_shapes=[pltpu.VMEM((1, cp), jnp.float32),
                        pltpu.VMEM((1, cp), jnp.float32)],
        compiler_params=pltpu.CompilerParams(
            dimension_semantics=("arbitrary",),          # reduction over M tiles
            vmem_limit_bytes=vmem_limit),
        cost_estimate=pl.CostEstimate(
            flops=flops_mm + 4 * mp * cp, transcendentals=cp,
            bytes_accessed=mp * kp * 2 + kp * cp * 2 + 4 * cp * 4),
    )(patches_p, w_p, gamma_p, beta_p)

    # ---- Pass 2: conv (recomputed) + folded BN + LeakyReLU -------------------------
    out_flat = pl.pallas_call(
        _conv_bn_lrelu_kernel,
        out_shape=jax.ShapeDtypeStruct((mp, cp), jnp.float32),
        grid=(n_tiles,),
        in_specs=[
            pl.BlockSpec((tm, kp), lambda i: (i, 0)),
            pl.BlockSpec((kp, cp), lambda i: (0, 0)),
            pl.BlockSpec((1, cp), lambda i: (0, 0)),
            pl.BlockSpec((1, cp), lambda i: (0, 0)),
        ],
        out_specs=pl.BlockSpec((tm, cp), lambda i: (i, 0)),
        compiler_params=pltpu.CompilerParams(
            dimension_semantics=("parallel",),            # independent M tiles (megacore)
            vmem_limit_bytes=vmem_limit),
        cost_estimate=pl.CostEstimate(
            flops=flops_mm + 4 * mp * cp, transcendentals=0,
            bytes_accessed=mp * kp * 2 + kp * cp * 2 + mp * cp * 4),
    )(patches_p, w_p, scale, shift)

    # Crop padding and return NCHW to match the PyTorch module.
    # TODO(synk): keep NHWC downstream to avoid this extra HBM transpose pass.
    out = out_flat[:m, :c_out].reshape(n, oh, ow, c_out).transpose(0, 3, 1, 2)
    return out


if __name__ == "__main__":
    # Shapes consistent with CNNBlock(4, 8, kernel_size=3, stride=1, padding=1)
    # applied to input (2, 4, 16, 16).
    N, C_IN, H, W = 2, 4, 16, 16
    C_OUT, KH, KW = 8, 3, 3

    key = jax.random.PRNGKey(0)
    kx, kw_ = jax.random.split(key)
    x = jax.random.normal(kx, (N, C_IN, H, W), dtype=jnp.float32)
    conv_w = 0.1 * jax.random.normal(kw_, (C_OUT, C_IN, KH, KW), dtype=jnp.float32)
    gamma = jnp.ones((C_OUT,), dtype=jnp.float32)   # BatchNorm2d default weight
    beta = jnp.zeros((C_OUT,), dtype=jnp.float32)   # BatchNorm2d default bias

    out = jax.jit(cnn_block_forward)(x, conv_w, gamma, beta)
    jax.block_until_ready(out)
    assert out.shape == (N, C_OUT, H, W)

    # Pure-JAX f32 reference (conv -> training-mode BN -> LeakyReLU) sanity check;
    # generous tolerance accounts for bf16 MXU operands.
    y_ref = jax.lax.conv_general_dilated(
        x, conv_w, window_strides=(1, 1), padding=((1, 1), (1, 1)),
        dimension_numbers=("NCHW", "OIHW", "NCHW"))
    mu = y_ref.mean(axis=(0, 2, 3), keepdims=True)
    vr = y_ref.var(axis=(0, 2, 3), keepdims=True)
    z = (y_ref - mu) * jax.lax.rsqrt(vr + 1e-5)
    z = z * gamma.reshape(1, -1, 1, 1) + beta.reshape(1, -1, 1, 1)
    ref = jnp.where(z > 0, z, 0.1 * z)
    assert float(jnp.max(jnp.abs(out - ref))) < 5e-2

    print("KERNEL_OK")
</pallas_src>

<mosaic_0001>
module attributes {stable_mosaic.version = 11 : i64} {
  func.func @_conv_bn_lrelu_kernel(%arg0: i32, %arg1: memref<256x128xbf16, #tpu.memory_space<vmem>>, %arg2: memref<128x128xbf16, #tpu.memory_space<vmem>>, %arg3: memref<1x128xf32, #tpu.memory_space<vmem>>, %arg4: memref<1x128xf32, #tpu.memory_space<vmem>>, %arg5: memref<256x128xf32, #tpu.memory_space<vmem>>) attributes {dimension_semantics = [#tpu.dimension_semantics<parallel>], iteration_bounds = array<i64: 2>, scalar_prefetch = 0 : i64, scratch_operands = 0 : i64, tpu.core_type = #tpu.core_type<tc>, window_params = [{transform_indices = @transform_0, window_bounds = array<i64: 256, 128>}, {pipeline_mode = #tpu.pipeline_mode<synchronous>, transform_indices = @transform_1, window_bounds = array<i64: 128, 128>}, {pipeline_mode = #tpu.pipeline_mode<synchronous>, transform_indices = @transform_2, window_bounds = array<i64: 1, 128>}, {pipeline_mode = #tpu.pipeline_mode<synchronous>, transform_indices = @transform_3, window_bounds = array<i64: 1, 128>}, {transform_indices = @transform_4, window_bounds = array<i64: 256, 128>}]} {
    %c0 = arith.constant 0 : index
    %c0_0 = arith.constant 0 : index
    %0 = vector.load %arg1[%c0, %c0_0] : memref<256x128xbf16, #tpu.memory_space<vmem>>, vector<256x128xbf16>
    %c0_1 = arith.constant 0 : index
    %c0_2 = arith.constant 0 : index
    %1 = vector.load %arg2[%c0_1, %c0_2] : memref<128x128xbf16, #tpu.memory_space<vmem>>, vector<128x128xbf16>
    %cst = arith.constant dense<0.000000e+00> : vector<256x128xf32>
    %2 = tpu.matmul %0, %1, %cst {dimension_numbers = #tpu.dot_dimension_numbers<[1], [0], [0], [1], [0, 0, 1, 1], [], []>} : vector<256x128xbf16>, vector<128x128xbf16>, vector<256x128xf32> -> vector<256x128xf32>
    %c0_3 = arith.constant 0 : index
    %c0_4 = arith.constant 0 : index
    %3 = vector.load %arg3[%c0_3, %c0_4] : memref<1x128xf32, #tpu.memory_space<vmem>>, vector<1x128xf32>
    %4 = vector.broadcast %3 : vector<1x128xf32> to vector<256x128xf32>
    %5 = arith.mulf %2, %4 : vector<256x128xf32>
    %c0_5 = arith.constant 0 : index
    %c0_6 = arith.constant 0 : index
    %6 = vector.load %arg4[%c0_5, %c0_6] : memref<1x128xf32, #tpu.memory_space<vmem>>, vector<1x128xf32>
    %7 = vector.broadcast %6 : vector<1x128xf32> to vector<256x128xf32>
    %8 = arith.addf %5, %7 : vector<256x128xf32>
    %cst_7 = arith.constant 0.000000e+00 : f32
    %9 = vector.broadcast %cst_7 : f32 to vector<256x128xf32>
    %10 = arith.cmpf ogt, %8, %9 : vector<256x128xf32>
    %cst_8 = arith.constant 1.000000e-01 : f32
    %11 = vector.broadcast %cst_8 : f32 to vector<256x128xf32>
    %12 = arith.mulf %11, %8 : vector<256x128xf32>
    %13 = arith.select %10, %8, %12 : vector<256x128xi1>, vector<256x128xf32>
    %c0_9 = arith.constant 0 : index
    %c0_10 = arith.constant 0 : index
    %14 = vector.load %arg5[%c0_9, %c0_10] : memref<256x128xf32, #tpu.memory_space<vmem>>, vector<256x128xf32>
    tpu.vector_store %arg5[%c0_9, %c0_10], %13 {strides = array<i32>} : memref<256x128xf32, #tpu.memory_space<vmem>>, vector<256x128xf32>,
    return
  }
  func.func @transform_0(%arg0: i32) -> (i32, i32) {
    %c0_i32 = arith.constant 0 : i32
    %c0_i32_0 = arith.constant 0 : i32
    return %arg0, %c0_i32 : i32, i32
  }
  func.func @transform_1(%arg0: i32) -> (i32, i32) {
    %c0_i32 = arith.constant 0 : i32
    %c0_i32_0 = arith.constant 0 : i32
    %c0_i32_1 = arith.constant 0 : i32
    return %c0_i32, %c0_i32_0 : i32, i32
  }
  func.func @transform_2(%arg0: i32) -> (i32, i32) {
    %c0_i32 = arith.constant 0 : i32
    %c0_i32_0 = arith.constant 0 : i32
    %c0_i32_1 = arith.constant 0 : i32
    return %c0_i32, %c0_i32_0 : i32, i32
  }
  func.func @transform_3(%arg0: i32) -> (i32, i32) {
    %c0_i32 = arith.constant 0 : i32
    %c0_i32_0 = arith.constant 0 : i32
    %c0_i32_1 = arith.constant 0 : i32
    return %c0_i32, %c0_i32_0 : i32, i32
  }
  func.func @transform_4(%arg0: i32) -> (i32, i32) {
    %c0_i32 = arith.constant 0 : i32
    %c0_i32_0 = arith.constant 0 : i32
    return %arg0, %c0_i32 : i32, i32
  }
}

module attributes {stable_mosaic.version = 11 : i64} {
  func.func @_conv_stats_kernel(%arg0: i32, %arg1: memref<256x128xbf16, #tpu.memory_space<vmem>>, %arg2: memref<128x128xbf16, #tpu.memory_space<vmem>>, %arg3: memref<1x128xf32, #tpu.memory_space<vmem>>, %arg4: memref<1x128xf32, #tpu.memory_space<vmem>>, %arg5: memref<1x128xf32, #tpu.memory_space<vmem>>, %arg6: memref<1x128xf32, #tpu.memory_space<vmem>>, %arg7: memref<1x128xf32, #tpu.memory_space<vmem>>, %arg8: memref<1x128xf32, #tpu.memory_space<vmem>>) attributes {dimension_semantics = [#tpu.dimension_semantics<arbitrary>], iteration_bounds = array<i64: 2>, scalar_prefetch = 0 : i64, scratch_operands = 2 : i64, tpu.core_type = #tpu.core_type<tc>, window_params = [{transform_indices = @transform_0, window_bounds = array<i64: 256, 128>}, {pipeline_mode = #tpu.pipeline_mode<synchronous>, transform_indices = @transform_1, window_bounds = array<i64: 128, 128>}, {pipeline_mode = #tpu.pipeline_mode<synchronous>, transform_indices = @transform_2, window_bounds = array<i64: 1, 128>}, {pipeline_mode = #tpu.pipeline_mode<synchronous>, transform_indices = @transform_3, window_bounds = array<i64: 1, 128>}, {pipeline_mode = #tpu.pipeline_mode<synchronous>, transform_indices = @transform_4, window_bounds = array<i64: 1, 128>}, {pipeline_mode = #tpu.pipeline_mode<synchronous>, transform_indices = @transform_5, window_bounds = array<i64: 1, 128>}]} {
    %c0_i32 = arith.constant 0 : i32
    %0 = arith.cmpi eq, %arg0, %c0_i32 : i32
    %1 = arith.extui %0 : i1 to i32
    %c0_i32_0 = arith.constant 0 : i32
    %2 = arith.cmpi ne, %1, %c0_i32_0 : i32
    scf.if %2 {
      %cst_16 = arith.constant 0.000000e+00 : f32
      %19 = vector.broadcast %cst_16 : f32 to vector<1x128xf32>
      %c0_17 = arith.constant 0 : index
      %c0_18 = arith.constant 0 : index
      %20 = vector.load %arg7[%c0_17, %c0_18] : memref<1x128xf32, #tpu.memory_space<vmem>>, vector<1x128xf32>
      tpu.vector_store %arg7[%c0_17, %c0_18], %19 {strides = array<i32>} : memref<1x128xf32, #tpu.memory_space<vmem>>, vector<1x128xf32>,
      %cst_19 = arith.constant 0.000000e+00 : f32
      %21 = vector.broadcast %cst_19 : f32 to vector<1x128xf32>
      %c0_20 = arith.constant 0 : index
      %c0_21 = arith.constant 0 : index
      %22 = vector.load %arg8[%c0_20, %c0_21] : memref<1x128xf32, #tpu.memory_space<vmem>>, vector<1x128xf32>
      tpu.vector_store %arg8[%c0_20, %c0_21], %21 {strides = array<i32>} : memref<1x128xf32, #tpu.memory_space<vmem>>, vector<1x128xf32>,
      %cst_22 = arith.constant 0.000000e+00 : f32
      %23 = vector.broadcast %cst_22 : f32 to vector<1x128xf32>
      %c0_23 = arith.constant 0 : index
      %c0_24 = arith.constant 0 : index
      %24 = vector.load %arg5[%c0_23, %c0_24] : memref<1x128xf32, #tpu.memory_space<vmem>>, vector<1x128xf32>
      tpu.vector_store %arg5[%c0_23, %c0_24], %23 {strides = array<i32>} : memref<1x128xf32, #tpu.memory_space<vmem>>, vector<1x128xf32>,
      %cst_25 = arith.constant 0.000000e+00 : f32
      %25 = vector.broadcast %cst_25 : f32 to vector<1x128xf32>
      %c0_26 = arith.constant 0 : index
      %c0_27 = arith.constant 0 : index
      %26 = vector.load %arg6[%c0_26, %c0_27] : memref<1x128xf32, #tpu.memory_space<vmem>>, vector<1x128xf32>
      tpu.vector_store %arg6[%c0_26, %c0_27], %25 {strides = array<i32>} : memref<1x128xf32, #tpu.memory_space<vmem>>, vector<1x128xf32>,
    } else {
    }
    %c0 = arith.constant 0 : index
    %c0_1 = arith.constant 0 : index
    %3 = vector.load %arg1[%c0, %c0_1] : memref<256x128xbf16, #tpu.memory_space<vmem>>, vector<256x128xbf16>
    %c0_2 = arith.constant 0 : index
    %c0_3 = arith.constant 0 : index
    %4 = vector.load %arg2[%c0_2, %c0_3] : memref<128x128xbf16, #tpu.memory_space<vmem>>, vector<128x128xbf16>
    %cst = arith.constant dense<0.000000e+00> : vector<256x128xf32>
    %5 = tpu.matmul %3, %4, %cst {dimension_numbers = #tpu.dot_dimension_numbers<[1], [0], [0], [1], [0, 0, 1, 1], [], []>} : vector<256x128xbf16>, vector<128x128xbf16>, vector<256x128xf32> -> vector<256x128xf32>
    %cst_4 = arith.constant 1.000000e+00 : f32
    %6 = vector.broadcast %cst_4 : f32 to vector<1x256xf32>
    %c0_5 = arith.constant 0 : index
    %c0_6 = arith.constant 0 : index
    %7 = vector.load %arg7[%c0_5, %c0_6] : memref<1x128xf32, #tpu.memory_space<vmem>>, vector<1x128xf32>
    %cst_7 = arith.constant dense<0.000000e+00> : vector<1x128xf32>
    %8 = tpu.matmul %6, %5, %cst_7 {dimension_numbers = #tpu.dot_dimension_numbers<[1], [0], [0], [1], [0, 0, 1, 1], [], []>} : vector<1x256xf32>, vector<256x128xf32>, vector<1x128xf32> -> vector<1x128xf32>
    %9 = arith.addf %7, %8 : vector<1x128xf32>
    %c0_8 = arith.constant 0 : index
    %c0_9 = arith.constant 0 : index
    %10 = vector.load %arg7[%c0_8, %c0_9] : memref<1x128xf32, #tpu.memory_space<vmem>>, vector<1x128xf32>
    tpu.vector_store %arg7[%c0_8, %c0_9], %9 {strides = array<i32>} : memref<1x128xf32, #tpu.memory_space<vmem>>, vector<1x128xf32>,
    %c0_10 = arith.constant 0 : index
    %c0_11 = arith.constant 0 : index
    %11 = vector.load %arg8[%c0_10, %c0_11] : memref<1x128xf32, #tpu.memory_space<vmem>>, vector<1x128xf32>
    %12 = arith.mulf %5, %5 : vector<256x128xf32>
    %cst_12 = arith.constant dense<0.000000e+00> : vector<1x128xf32>
    %13 = tpu.matmul %6, %12, %cst_12 {dimension_numbers = #tpu.dot_dimension_numbers<[1], [0], [0], [1], [0, 0, 1, 1], [], []>} : vector<1x256xf32>, vector<256x128xf32>, vector<1x128xf32> -> vector<1x128xf32>
    %14 = arith.addf %11, %13 : vector<1x128xf32>
    %c0_13 = arith.constant 0 : index
    %c0_14 = arith.constant 0 : index
    %15 = vector.load %arg8[%c0_13, %c0_14] : memref<1x128xf32, #tpu.memory_space<vmem>>, vector<1x128xf32>
    tpu.vector_store %arg8[%c0_13, %c0_14], %14 {strides = array<i32>} : memref<1x128xf32, #tpu.memory_space<vmem>>, vector<1x128xf32>,
    %c1_i32 = arith.constant 1 : i32
    %16 = arith.cmpi eq, %arg0, %c1_i32 : i32
    %17 = arith.extui %16 : i1 to i32
    %c0_i32_15 = arith.constant 0 : i32
    %18 = arith.cmpi ne, %17, %c0_i32_15 : i32
    scf.if %18 {
      %c0_16 = arith.constant 0 : index
      %c0_17 = arith.constant 0 : index
      %19 = vector.load %arg7[%c0_16, %c0_17] : memref<1x128xf32, #tpu.memory_space<vmem>>, vector<1x128xf32>
      %cst_18 = arith.constant 0.001953125 : f32
      %20 = vector.broadcast %cst_18 : f32 to vector<1x128xf32>
      %21 = arith.mulf %19, %20 : vector<1x128xf32>
      %c0_19 = arith.constant 0 : index
      %c0_20 = arith.constant 0 : index
      %22 = vector.load %arg8[%c0_19, %c0_20] : memref<1x128xf32, #tpu.memory_space<vmem>>, vector<1x128xf32>
      %cst_21 = arith.constant 0.001953125 : f32
      %23 = vector.broadcast %cst_21 : f32 to vector<1x128xf32>
      %24 = arith.mulf %22, %23 : vector<1x128xf32>
      %25 = arith.mulf %21, %21 : vector<1x128xf32>
      %26 = arith.subf %24, %25 : vector<1x128xf32>
      %cst_22 = arith.constant 0.000000e+00 : f32
      %27 = vector.broadcast %cst_22 : f32 to vector<1x128xf32>
      %28 = arith.maximumf %26, %27 : vector<1x128xf32>
      %c0_23 = arith.constant 0 : index
      %c0_24 = arith.constant 0 : index
      %29 = vector.load %arg3[%c0_23, %c0_24] : memref<1x128xf32, #tpu.memory_space<vmem>>, vector<1x128xf32>
      %cst_25 = arith.constant 9.99999974E-6 : f32
      %30 = vector.broadcast %cst_25 : f32 to vector<1x128xf32>
      %31 = arith.addf %28, %30 : vector<1x128xf32>
      %32 = math.rsqrt %31 : vector<1x128xf32>
      %33 = arith.mulf %29, %32 : vector<1x128xf32>
      %c0_26 = arith.constant 0 : index
      %c0_27 = arith.constant 0 : index
      %34 = vector.load %arg5[%c0_26, %c0_27] : memref<1x128xf32, #tpu.memory_space<vmem>>, vector<1x128xf32>
      tpu.vector_store %arg5[%c0_26, %c0_27], %33 {strides = array<i32>} : memref<1x128xf32, #tpu.memory_space<vmem>>, vector<1x128xf32>,
      %c0_28 = arith.constant 0 : index
      %c0_29 = arith.constant 0 : index
      %35 = vector.load %arg4[%c0_28, %c0_29] : memref<1x128xf32, #tpu.memory_space<vmem>>, vector<1x128xf32>
      %36 = arith.mulf %21, %33 : vector<1x128xf32>
      %37 = arith.subf %35, %36 : vector<1x128xf32>
      %c0_30 = arith.constant 0 : index
      %c0_31 = arith.constant 0 : index
      %38 = vector.load %arg6[%c0_30, %c0_31] : memref<1x128xf32, #tpu.memory_space<vmem>>, vector<1x128xf32>
      tpu.vector_store %arg6[%c0_30, %c0_31], %37 {strides = array<i32>} : memref<1x128xf32, #tpu.memory_space<vmem>>, vector<1x128xf32>,
    } else {
    }
    return
  }
  func.func @transform_0(%arg0: i32) -> (i32, i32) {
    %c0_i32 = arith.constant 0 : i32
    %c0_i32_0 = arith.constant 0 : i32
    return %arg0, %c0_i32 : i32, i32
  }
  func.func @transform_1(%arg0: i32) -> (i32, i32) {
    %c0_i32 = arith.constant 0 : i32
    %c0_i32_0 = arith.constant 0 : i32
    %c0_i32_1 = arith.constant 0 : i32
    return %c0_i32, %c0_i32_0 : i32, i32
  }
  func.func @transform_2(%arg0: i32) -> (i32, i32) {
    %c0_i32 = arith.constant 0 : i32
    %c0_i32_0 = arith.constant 0 : i32
    %c0_i32_1 = arith.constant 0 : i32
    return %c0_i32, %c0_i32_0 : i32, i32
  }
  func.func @transform_3(%arg0: i32) -> (i32, i32) {
    %c0_i32 = arith.constant 0 : i32
    %c0_i32_0 = arith.constant 0 : i32
    %c0_i32_1 = arith.constant 0 : i32
    return %c0_i32, %c0_i32_0 : i32, i32
  }
  func.func @transform_4(%arg0: i32) -> (i32, i32) {
    %c0_i32 = arith.constant 0 : i32
    %c0_i32_0 = arith.constant 0 : i32
    %c0_i32_1 = arith.constant 0 : i32
    return %c0_i32, %c0_i32_0 : i32, i32
  }
  func.func @transform_5(%arg0: i32) -> (i32, i32) {
    %c0_i32 = arith.constant 0 : i32
    %c0_i32_0 = arith.constant 0 : i32
    %c0_i32_1 = arith.constant 0 : i32
    return %c0_i32, %c0_i32_0 : i32, i32
  }
}

</mosaic_0001>

<llo_original>
// kernel: cnn_block_forward.3
$region0: #{cnn_block_forward.3}
  #allocation0 [shape = 'u32[]', space=smem, size = 0x4, offset = 0x4, fixed_abs, tag = 'smem constant byte address 0x4 - core index']
  #allocation1 [shape = 'u32[72,128]{1,0:T(1,128)}', space=vmem, size = 0x9000, scoped, tag = 'internal scratch']
  %s0 = inlined_call_operand.vmem [shape: bf16[512,128], index: 0, kind: input, shape index: {}]
  %s1 = inlined_call_operand.vmem [shape: bf16[128,128], index: 1, kind: input, shape index: {}]
  %s2 = inlined_call_operand.vmem [shape: f32[1,128], index: 2, kind: input, shape index: {}]
  %s3 = inlined_call_operand.vmem [shape: f32[1,128], index: 3, kind: input, shape index: {}]
  %s4 = inlined_call_operand.vmem [shape: f32[512,128], index: 4, kind: output, shape index: {}]
  %s5 = sld [smem:[#allocation0]]
  $region49: #{cnn_block_forward.3} parent=0
    _
  %s7 = ssub.s32 1, %s5
  %s8 = scalar_select 0, %s7, %s5
  loop: start=0, step=1, limit=4
  $region2: #{cnn_block_forward.3} parent=0 // loop_pre_header
    _
  $region3: #{cnn_block_forward.3} parent=0 // loop_header
    %s10 = sphi 0, %s14
    %p11 = scmp.ge.s32.totalorder %s10, 4
    %s20 = sphi 0, %s22
    %s23 = sphi 0, %s20
    %s24 = sphi 0, %s23
    %s40 = sphi 0, %s24
    %s44 = sphi 0, %s44
    %s46 = sphi 0, %s44
    %s47 = sphi 0, %s46
    %s61 = sphi 0, %s47
    %s65 = sphi 0, %s65
    %s67 = sphi 0, %s65
    %s68 = sphi 0, %s67
    %s82 = sphi 0, %s68
    %s86 = sphi 0, %s86
    %s88 = sphi 0, %s86
    %s89 = sphi 0, %s88
    %s103 = sphi 0, %s89
    %s109 = sphi 0, %s111
    %s112 = sphi 0, %s109
    %s113 = sphi 0, %s112
    %s129 = sphi 0, %s113
  $region4: #{cnn_block_forward.3} parent=0 // loop_header_branch
    %13 = sbr.rel (%p11) target = $region8
  $region5: #{cnn_block_forward.3} parent=0 // loop_body
    %s15 = ssub.s32 %s10, 1
    %s16 = ssub.s32 %s10, 2
    %s17 = sadd.s32 %s10, 1
    %s18 = ssub.s32 %s10, %s17
    %p19 = scmp.eq.s32.totalorder %s18, 0
    %s21 = sadd.s32 %s20, 1
    %s22 = scalar_select %p19, %s20, %s21
    %p25 = pneg %p19
    %p26 = scmp.eq.s32.totalorder %s10, 1
    %p27 = por %p25, %p26
    %p28 = scmp.ne.s32.totalorder %s20, %s23
    %p29 = scmp.eq.s32.totalorder %s10, 0
    %p30 = por %p28, %p29
    %p31 = scmp.ne.s32.totalorder %s20, %s23
    %p32 = scmp.eq.s32.totalorder %s15, 1
    %p33 = por %p31, %p32
    %p34 = scmp.ne.s32.totalorder %s23, %s24
    %p35 = scmp.eq.s32.totalorder %s15, 0
    %p36 = por %p34, %p35
    %p37 = scmp.ne.s32.totalorder %s23, %s24
    %p38 = scmp.eq.s32.totalorder %s16, 1
    %p39 = por %p37, %p38
    %p41 = scmp.ne.s32.totalorder %s24, %s40
    %p42 = scmp.eq.s32.totalorder %s16, 0
    %p43 = por %p41, %p42
    %s45 = sadd.s32 %s44, 1
    %p48 = scmp.eq.s32.totalorder %s10, 1
    %p49 = scmp.ne.s32.totalorder %s44, %s46
    %p50 = scmp.eq.s32.totalorder %s10, 0
    %p51 = por %p49, %p50
    %p52 = scmp.ne.s32.totalorder %s44, %s46
    %p53 = scmp.eq.s32.totalorder %s15, 1
    %p54 = por %p52, %p53
    %p55 = scmp.ne.s32.totalorder %s46, %s47
    %p56 = scmp.eq.s32.totalorder %s15, 0
    %p57 = por %p55, %p56
    %p58 = scmp.ne.s32.totalorder %s46, %s47
    %p59 = scmp.eq.s32.totalorder %s16, 1
    %p60 = por %p58, %p59
    %p62 = scmp.ne.s32.totalorder %s47, %s61
    %p63 = scmp.eq.s32.totalorder %s16, 0
    %p64 = por %p62, %p63
    %s66 = sadd.s32 %s65, 1
    %p69 = scmp.eq.s32.totalorder %s10, 1
    %p70 = scmp.ne.s32.totalorder %s65, %s67
    %p71 = scmp.eq.s32.totalorder %s10, 0
    %p72 = por %p70, %p71
    %p73 = scmp.ne.s32.totalorder %s65, %s67
    %p74 = scmp.eq.s32.totalorder %s15, 1
    %p75 = por %p73, %p74
    %p76 = scmp.ne.s32.totalorder %s67, %s68
    %p77 = scmp.eq.s32.totalorder %s15, 0
    %p78 = por %p76, %p77
    %p79 = scmp.ne.s32.totalorder %s67, %s68
    %p80 = scmp.eq.s32.totalorder %s16, 1
    %p81 = por %p79, %p80
    %p83 = scmp.ne.s32.totalorder %s68, %s82
    %p84 = scmp.eq.s32.totalorder %s16, 0
    %p85 = por %p83, %p84
    %s87 = sadd.s32 %s86, 1
    %p90 = scmp.eq.s32.totalorder %s10, 1
    %p91 = scmp.ne.s32.totalorder %s86, %s88
    %p92 = scmp.eq.s32.totalorder %s10, 0
    %p93 = por %p91, %p92
    %p94 = scmp.ne.s32.totalorder %s86, %s88
    %p95 = scmp.eq.s32.totalorder %s15, 1
    %p96 = por %p94, %p95
    %p97 = scmp.ne.s32.totalorder %s88, %s89
    %p98 = scmp.eq.s32.totalorder %s15, 0
    %p99 = por %p97, %p98
    %p100 = scmp.ne.s32.totalorder %s88, %s89
    %p101 = scmp.eq.s32.totalorder %s16, 1
    %p102 = por %p100, %p101
    %p104 = scmp.ne.s32.totalorder %s89, %s103
    %p105 = scmp.eq.s32.totalorder %s16, 0
    %p106 = por %p104, %p105
    %s107 = ssub.s32 %s10, %s17
    %p108 = scmp.eq.s32.totalorder %s107, 0
    %s110 = sadd.s32 %s109, 1
    %s111 = scalar_select %p108, %s109, %s110
    %p114 = pneg %p108
    %p115 = scmp.eq.s32.totalorder %s10, 1
    %p116 = por %p114, %p115
    %p117 = scmp.ne.s32.totalorder %s109, %s112
    %p118 = scmp.eq.s32.totalorder %s10, 0
    %p119 = por %p117, %p118
    %p120 = scmp.ne.s32.totalorder %s109, %s112
    %p121 = scmp.eq.s32.totalorder %s15, 1
    %p122 = por %p120, %p121
    %p123 = scmp.ne.s32.totalorder %s112, %s113
    %p124 = scmp.eq.s32.totalorder %s15, 0
    %p125 = por %p123, %p124
    %p126 = scmp.ne.s32.totalorder %s112, %s113
    %p127 = scmp.eq.s32.totalorder %s16, 1
    %p128 = por %p126, %p127
    %p130 = scmp.ne.s32.totalorder %s113, %s129
    %p131 = scmp.eq.s32.totalorder %s16, 0
    %p132 = por %p130, %p131
    %p133 = scmp.le.s32.totalorder 1, %s10
    %p134 = scmp.lt.s32.totalorder %s10, 3
    %p135 = pnand %p133, %p134
    %p136 = pneg %p135
    // Predicated region
    $region9: #{cnn_block_forward.3} parent=5 // pred_check
      _
    $region10: #{cnn_block_forward.3} parent=5 // pred_check_branch
      %138 = sbr.rel (%p135) target = $region12
    $region11: #{cnn_block_forward.3} parent=5 // pred_region
      %s139 = ssub.s32 %s10, 1
      // Predicated region
      $region13: #{cnn_block_forward.3} parent=11 // pred_check
        %p140 = pneg %p57
      $region14: #{cnn_block_forward.3} parent=11 // pred_check_branch
        %142 = sbr.rel (%p140) target = $region16
      $region15: #{cnn_block_forward.3} parent=11 // pred_region
        _
      $region16: #{cnn_block_forward.3} parent=11 // pred_fallthru
        _
      // Predicated region
      $region17: #{cnn_block_forward.3} parent=11 // pred_check
        %p143 = pneg %p78
      $region18: #{cnn_block_forward.3} parent=11 // pred_check_branch
        %145 = sbr.rel (%p143) target = $region20
      $region19: #{cnn_block_forward.3} parent=11 // pred_region
        _
      $region20: #{cnn_block_forward.3} parent=11 // pred_fallthru
        _
      // Predicated region
      $region21: #{cnn_block_forward.3} parent=11 // pred_check
        %p146 = pneg %p99
      $region22: #{cnn_block_forward.3} parent=11 // pred_check_branch
        %148 = sbr.rel (%p146) target = $region24
      $region23: #{cnn_block_forward.3} parent=11 // pred_region
        _
      $region24: #{cnn_block_forward.3} parent=11 // pred_fallthru
        _
    $region12: #{cnn_block_forward.3} parent=5 // pred_fallthru
      _
    %p149 = scmp.lt.s32.totalorder %s10, 2
    // Predicated region
    $region25: #{cnn_block_forward.3} parent=5 // pred_check
      %p150 = pneg %p149
    $region26: #{cnn_block_forward.3} parent=5 // pred_check_branch
      %152 = sbr.rel (%p150) target = $region28
    $region27: #{cnn_block_forward.3} parent=5 // pred_region
      // Predicated region
      $region29: #{cnn_block_forward.3} parent=27 // pred_check
        %p153 = pneg %p30
      $region30: #{cnn_block_forward.3} parent=27 // pred_check_branch
        %155 = sbr.rel (%p153) target = $region32
      $region31: #{cnn_block_forward.3} parent=27 // pred_region
        %s156 = smul.u32 32, %s10
        %p157 = scmp.lt.s32.totalorder %s156, 63
        %s158 = scalar_select %p157, %s156, 63
        %s159 = smul.addr %s158, 4
        %s160 = scalar_lea.vmem %s0, %s159
        %s161 = smul.u32 32, %s10
      $region32: #{cnn_block_forward.3} parent=27 // pred_fallthru
        _
    $region28: #{cnn_block_forward.3} parent=5 // pred_fallthru
      _
    %p162 = scmp.le.s32.totalorder 1, %s10
    %p163 = scmp.lt.s32.totalorder %s10, 3
    %p164 = pnand %p162, %p163
    %p165 = pneg %p164
    // Predicated region
    $region33: #{cnn_block_forward.3} parent=5 // pred_check
      _
    $region34: #{cnn_block_forward.3} parent=5 // pred_check_branch
      %167 = sbr.rel (%p164) target = $region36
    $region35: #{cnn_block_forward.3} parent=5 // pred_region
      %s168 = ssub.s32 %s10, 1
      %s169 = smul.u32 32, %s15
      %p170 = scmp.lt.s32.totalorder %s169, 63
      %s171 = scalar_select %p170, %s169, 63
      %s172 = smul.addr %s171, 4
      %s173 = scalar_lea.vmem %s0, %s172
      %p174 = pneg %p36
      %p175 = pneg %p33
      %p176 = pneg %p57
      %p177 = pneg %p54
      %p178 = pneg %p78
      %p179 = pneg %p75
      %p180 = pneg %p99
      %p181 = pneg %p96
      %p182 = pneg %p125
      %p183 = pneg %p122
      %s184 = smul.u32 32, %s15
      %p185 = scmp.lt.s32.totalorder %s184, 63
      %s186 = scalar_select %p185, %s184, 63
      %s187 = smul.addr %s186, 8
      %s188 = scalar_lea.vmem %s4, %s187
      %s189 = smul.u32 32, %s15
      %p190 = scmp.lt.s32.totalorder %s189, 63
      %s191 = scalar_select %p190, %s189, 63
      %s192 = smul.addr %s191, 4
      %s193 = scalar_lea.vmem %s0, %s192
      %s194 = smul.u32 32, %s15
      %s195 = smul.u32 32, %s15
      %p196 = scmp.lt.s32.totalorder %s195, 63
      %s197 = scalar_select %p196, %s195, 63
      %s198 = smul.addr %s197, 8
      %s199 = scalar_lea.vmem %s4, %s198
      %s200 = smul.u32 32, %s15
      %v201 = vld [vmem:[%s193] sm:$0xf]
      %v202 = vld [vmem:[%s193 + $0x4] sm:$0xf]
      %v203 = vld [vmem:[%s193 + $0x8] sm:$0xf]
      %v204 = vld [vmem:[%s193 + $0xc] sm:$0xf]
      %v205 = vld [vmem:[%s193 + $0x10] sm:$0xf]
      %v206 = vld [vmem:[%s193 + $0x14] sm:$0xf]
      %v207 = vld [vmem:[%s193 + $0x18] sm:$0xf]
      %v208 = vld [vmem:[%s193 + $0x1c] sm:$0xf]
      %v209 = vld [vmem:[%s193 + $0x20] sm:$0xf]
      %v210 = vld [vmem:[%s193 + $0x24] sm:$0xf]
      %v211 = vld [vmem:[%s193 + $0x28] sm:$0xf]
      %v212 = vld [vmem:[%s193 + $0x2c] sm:$0xf]
      %v213 = vld [vmem:[%s193 + $0x30] sm:$0xf]
      %v214 = vld [vmem:[%s193 + $0x34] sm:$0xf]
      %v215 = vld [vmem:[%s193 + $0x38] sm:$0xf]
      %v216 = vld [vmem:[%s193 + $0x3c] sm:$0xf]
      %v217 = vld [vmem:[%s193 + $0x40] sm:$0xf]
      %v218 = vld [vmem:[%s193 + $0x44] sm:$0xf]
      %v219 = vld [vmem:[%s193 + $0x48] sm:$0xf]
      %v220 = vld [vmem:[%s193 + $0x4c] sm:$0xf]
      %v221 = vld [vmem:[%s193 + $0x50] sm:$0xf]
      %v222 = vld [vmem:[%s193 + $0x54] sm:$0xf]
      %v223 = vld [vmem:[%s193 + $0x58] sm:$0xf]
      %v224 = vld [vmem:[%s193 + $0x5c] sm:$0xf]
      %v225 = vld [vmem:[%s193 + $0x60] sm:$0xf]
      %v226 = vld [vmem:[%s193 + $0x64] sm:$0xf]
      %v227 = vld [vmem:[%s193 + $0x68] sm:$0xf]
      %v228 = vld [vmem:[%s193 + $0x6c] sm:$0xf]
      %v229 = vld [vmem:[%s193 + $0x70] sm:$0xf]
      %v230 = vld [vmem:[%s193 + $0x74] sm:$0xf]
      %v231 = vld [vmem:[%s193 + $0x78] sm:$0xf]
      %v232 = vld [vmem:[%s193 + $0x7c] sm:$0xf]
      %v233 = vld [vmem:[%s1] sm:$0xf]
      %v234 = vld [vmem:[%s1 + $0x4] sm:$0xf]
      %v235 = vld [vmem:[%s1 + $0x8] sm:$0xf]
      %v236 = vld [vmem:[%s1 + $0xc] sm:$0xf]
      %v237 = vld [vmem:[%s1 + $0x10] sm:$0xf]
      %v238 = vld [vmem:[%s1 + $0x14] sm:$0xf]
      %v239 = vld [vmem:[%s1 + $0x18] sm:$0xf]
      %v240 = vld [vmem:[%s1 + $0x1c] sm:$0xf]
      %v241 = vld [vmem:[%s1 + $0x20] sm:$0xf]
      %v242 = vld [vmem:[%s1 + $0x24] sm:$0xf]
      %v243 = vld [vmem:[%s1 + $0x28] sm:$0xf]
      %v244 = vld [vmem:[%s1 + $0x2c] sm:$0xf]
      %v245 = vld [vmem:[%s1 + $0x30] sm:$0xf]
      %v246 = vld [vmem:[%s1 + $0x34] sm:$0xf]
      %v247 = vld [vmem:[%s1 + $0x38] sm:$0xf]
      %v248 = vld [vmem:[%s1 + $0x3c] sm:$0xf]
      %v281 = vunpack.c.l.b16 %v201
      %v282 = vunpack.c.l.b16 %v202
      %v283 = vunpack.c.l.b16 %v203
      %v284 = vunpack.c.l.b16 %v204
      %v285 = vunpack.c.l.b16 %v205
      %v286 = vunpack.c.l.b16 %v206
      %v287 = vunpack.c.l.b16 %v207
      %v288 = vunpack.c.l.b16 %v208
      %v289 = vunpack.c.l.b16 %v209
      %v290 = vunpack.c.l.b16 %v210
      %v291 = vunpack.c.l.b16 %v211
      %v292 = vunpack.c.l.b16 %v212
      %v293 = vunpack.c.l.b16 %v213
      %v294 = vunpack.c.l.b16 %v214
      %v295 = vunpack.c.l.b16 %v215
      %v296 = vunpack.c.l.b16 %v216
      %v297 = vunpack.c.l.b16 %v217
      %v298 = vunpack.c.l.b16 %v218
      %v299 = vunpack.c.l.b16 %v219
      %v300 = vunpack.c.l.b16 %v220
      %v301 = vunpack.c.l.b16 %v221
      %v302 = vunpack.c.l.b16 %v222
      %v303 = vunpack.c.l.b16 %v223
      %v304 = vunpack.c.l.b16 %v224
      %v305 = vunpack.c.l.b16 %v225
      %v306 = vunpack.c.l.b16 %v226
      %v307 = vunpack.c.l.b16 %v227
      %v308 = vunpack.c.l.b16 %v228
      %v309 = vunpack.c.l.b16 %v229
      %v310 = vunpack.c.l.b16 %v230
      %v311 = vunpack.c.l.b16 %v231
      %v312 = vunpack.c.l.b16 %v232
      %v313 = vpack.c.b16 %v282, %v281
      %v314 = vpack.c.b16 %v284, %v283
      %v315 = vpack.c.b16 %v286, %v285
      %v316 = vpack.c.b16 %v288, %v287
      %v317 = vpack.c.b16 %v290, %v289
      %v318 = vpack.c.b16 %v292, %v291
      %v319 = vpack.c.b16 %v294, %v293
      %v320 = vpack.c.b16 %v296, %v295
      %v321 = vpack.c.b16 %v298, %v297
      %v322 = vpack.c.b16 %v300, %v299
      %v323 = vpack.c.b16 %v302, %v301
      %v324 = vpack.c.b16 %v304, %v303
      %v325 = vpack.c.b16 %v306, %v305
      %v326 = vpack.c.b16 %v308, %v307
      %v327 = vpack.c.b16 %v310, %v309
      %v328 = vpack.c.b16 %v312, %v311
      %v361 = vunpack.c.l.b16 %v233
      %v362 = vunpack.c.l.b16 %v234
      %v363 = vunpack.c.l.b16 %v235
      %v364 = vunpack.c.l.b16 %v236
      %v365 = vunpack.c.l.b16 %v237
      %v366 = vunpack.c.l.b16 %v238
      %v367 = vunpack.c.l.b16 %v239
      %v368 = vunpack.c.l.b16 %v240
      %v369 = vunpack.c.l.b16 %v241
      %v370 = vunpack.c.l.b16 %v242
      %v371 = vunpack.c.l.b16 %v243
      %v372 = vunpack.c.l.b16 %v244
      %v373 = vunpack.c.l.b16 %v245
      %v374 = vunpack.c.l.b16 %v246
      %v375 = vunpack.c.l.b16 %v247
      %v376 = vunpack.c.l.b16 %v248
      %v377 = vpack.c.b16 %v362, %v361
      %v378 = vpack.c.b16 %v364, %v363
      %v379 = vpack.c.b16 %v366, %v365
      %v380 = vpack.c.b16 %v368, %v367
      %v381 = vpack.c.b16 %v370, %v369
      %v382 = vpack.c.b16 %v372, %v371
      %v383 = vpack.c.b16 %v374, %v373
      %v384 = vpack.c.b16 %v376, %v375
      %393 = vmatpush.bf16.msra.mxu0 %v384
      %394 = vmatpush.bf16.msra.mxu0 %v383
      %395 = vmatpush.bf16.msra.mxu0 %v382
      %396 = vmatpush.bf16.msra.mxu0 %v381
      %397 = vmatpush.bf16.msra.mxu0 %v380
      %398 = vmatpush.bf16.msra.mxu0 %v379
      %399 = vmatpush.bf16.msra.mxu0 %v378
      %400 = vmatpush.bf16.msra.mxu0 %v377
      %401 = vmatmul.bf16.gmra.mxu0 %v313
      %v402 = vpop.f32.mrf.mxu0
      %v403 = vadd.f32 0.0, %v402
      %v404 = vpop.f32.mrf.mxu0
      %v405 = vadd.f32 0.0, %v404
      %406 = vmatmul.bf16.gmra.mxu0 %v314
      %v407 = vpop.f32.mrf.mxu0
      %v408 = vadd.f32 0.0, %v407
      %v409 = vpop.f32.mrf.mxu0
      %v410 = vadd.f32 0.0, %v409
      %411 = vmatmul.bf16.gmra.mxu0 %v315
      %v412 = vpop.f32.mrf.mxu0
      %v413 = vadd.f32 0.0, %v412
      %v414 = vpop.f32.mrf.mxu0
      %v415 = vadd.f32 0.0, %v414
      %416 = vmatmul.bf16.gmra.mxu0 %v316
      %v417 = vpop.f32.mrf.mxu0
      %v418 = vadd.f32 0.0, %v417
      %v419 = vpop.f32.mrf.mxu0
      %v420 = vadd.f32 0.0, %v419
      %421 = vmatmul.bf16.gmra.mxu0 %v317
      %v422 = vpop.f32.mrf.mxu0
      %v423 = vadd.f32 0.0, %v422
      %v424 = vpop.f32.mrf.mxu0
      %v425 = vadd.f32 0.0, %v424
      %426 = vmatmul.bf16.gmra.mxu0 %v318
      %v427 = vpop.f32.mrf.mxu0
      %v428 = vadd.f32 0.0, %v427
      %v429 = vpop.f32.mrf.mxu0
      %v430 = vadd.f32 0.0, %v429
      %431 = vmatmul.bf16.gmra.mxu0 %v319
      %v432 = vpop.f32.mrf.mxu0
      %v433 = vadd.f32 0.0, %v432
      %v434 = vpop.f32.mrf.mxu0
      %v435 = vadd.f32 0.0, %v434
      %436 = vmatmul.bf16.gmra.mxu0 %v320
      %v437 = vpop.f32.mrf.mxu0
      %v438 = vadd.f32 0.0, %v437
      %v439 = vpop.f32.mrf.mxu0
      %v440 = vadd.f32 0.0, %v439
      %441 = vmatmul.bf16.gmra.mxu0 %v321
      %v442 = vpop.f32.mrf.mxu0
      %v443 = vadd.f32 0.0, %v442
      %v444 = vpop.f32.mrf.mxu0
      %v445 = vadd.f32 0.0, %v444
      %446 = vmatmul.bf16.gmra.mxu0 %v322
      %v447 = vpop.f32.mrf.mxu0
      %v448 = vadd.f32 0.0, %v447
      %v449 = vpop.f32.mrf.mxu0
      %v450 = vadd.f32 0.0, %v449
      %451 = vmatmul.bf16.gmra.mxu0 %v323
      %v452 = vpop.f32.mrf.mxu0
      %v453 = vadd.f32 0.0, %v452
      %v454 = vpop.f32.mrf.mxu0
      %v455 = vadd.f32 0.0, %v454
      %456 = vmatmul.bf16.gmra.mxu0 %v324
      %v457 = vpop.f32.mrf.mxu0
      %v458 = vadd.f32 0.0, %v457
      %v459 = vpop.f32.mrf.mxu0
      %v460 = vadd.f32 0.0, %v459
      %461 = vmatmul.bf16.gmra.mxu0 %v325
      %v462 = vpop.f32.mrf.mxu0
      %v463 = vadd.f32 0.0, %v462
      %v464 = vpop.f32.mrf.mxu0
      %v465 = vadd.f32 0.0, %v464
      %466 = vmatmul.bf16.gmra.mxu0 %v326
      %v467 = vpop.f32.mrf.mxu0
      %v468 = vadd.f32 0.0, %v467
      %v469 = vpop.f32.mrf.mxu0
      %v470 = vadd.f32 0.0, %v469
      %471 = vmatmul.bf16.gmra.mxu0 %v327
      %v472 = vpop.f32.mrf.mxu0
      %v473 = vadd.f32 0.0, %v472
      %v474 = vpop.f32.mrf.mxu0
      %v475 = vadd.f32 0.0, %v474
      %476 = vmatmul.bf16.gmra.mxu0 %v328
      %v477 = vpop.f32.mrf.mxu0
      %v478 = vadd.f32 0.0, %v477
      %v479 = vpop.f32.mrf.mxu0
      %v480 = vadd.f32 0.0, %v479
      %481 = vdwg.mxu0
      %v482 = vld [vmem:[%s2] sm:$0x1]
      %v484 = vperm.slane %v482, 0
      %v486 = vmul.f32 %v403, %v484
      %v487 = vmul.f32 %v405, %v484
      %v488 = vmul.f32 %v408, %v484
      %v489 = vmul.f32 %v410, %v484
      %v490 = vmul.f32 %v413, %v484
      %v491 = vmul.f32 %v415, %v484
      %v492 = vmul.f32 %v418, %v484
      %v493 = vmul.f32 %v420, %v484
      %v494 = vmul.f32 %v423, %v484
      %v495 = vmul.f32 %v425, %v484
      %v496 = vmul.f32 %v428, %v484
      %v497 = vmul.f32 %v430, %v484
      %v498 = vmul.f32 %v433, %v484
      %v499 = vmul.f32 %v435, %v484
      %v500 = vmul.f32 %v438, %v484
      %v501 = vmul.f32 %v440, %v484
      %v502 = vmul.f32 %v443, %v484
      %v503 = vmul.f32 %v445, %v484
      %v504 = vmul.f32 %v448, %v484
      %v505 = vmul.f32 %v450, %v484
      %v506 = vmul.f32 %v453, %v484
      %v507 = vmul.f32 %v455, %v484
      %v508 = vmul.f32 %v458, %v484
      %v509 = vmul.f32 %v460, %v484
      %v510 = vmul.f32 %v463, %v484
      %v511 = vmul.f32 %v465, %v484
      %v512 = vmul.f32 %v468, %v484
      %v513 = vmul.f32 %v470, %v484
      %v514 = vmul.f32 %v473, %v484
      %v515 = vmul.f32 %v475, %v484
      %v516 = vmul.f32 %v478, %v484
      %v517 = vmul.f32 %v480, %v484
      %v518 = vld [vmem:[%s3] sm:$0x1]
      %v520 = vperm.slane %v518, 0
      %v522 = vadd.f32 %v486, %v520
      %v523 = vadd.f32 %v487, %v520
      %v524 = vadd.f32 %v488, %v520
      %v525 = vadd.f32 %v489, %v520
      %v526 = vadd.f32 %v490, %v520
      %v527 = vadd.f32 %v491, %v520
      %v528 = vadd.f32 %v492, %v520
      %v529 = vadd.f32 %v493, %v520
      %v530 = vadd.f32 %v494, %v520
      %v531 = vadd.f32 %v495, %v520
      %v532 = vadd.f32 %v496, %v520
      %v533 = vadd.f32 %v497, %v520
      %v534 = vadd.f32 %v498, %v520
      %v535 = vadd.f32 %v499, %v520
      %v536 = vadd.f32 %v500, %v520
      %v537 = vadd.f32 %v501, %v520
      %v538 = vadd.f32 %v502, %v520
      %v539 = vadd.f32 %v503, %v520
      %v540 = vadd.f32 %v504, %v520
      %v541 = vadd.f32 %v505, %v520
      %v542 = vadd.f32 %v506, %v520
      %v543 = vadd.f32 %v507, %v520
      %v544 = vadd.f32 %v508, %v520
      %v545 = vadd.f32 %v509, %v520
      %v546 = vadd.f32 %v510, %v520
      %v547 = vadd.f32 %v511, %v520
      %v548 = vadd.f32 %v512, %v520
      %v549 = vadd.f32 %v513, %v520
      %v550 = vadd.f32 %v514, %v520
      %v551 = vadd.f32 %v515, %v520
      %v552 = vadd.f32 %v516, %v520
      %v553 = vadd.f32 %v517, %v520
      %vm554 = vcmp.gt.f32.partialorder %v522, 0.0
      %vm555 = vcmp.gt.f32.partialorder %v523, 0.0
      %vm556 = vcmp.gt.f32.partialorder %v524, 0.0
      %vm557 = vcmp.gt.f32.partialorder %v525, 0.0
      %vm558 = vcmp.gt.f32.partialorder %v526, 0.0
      %vm559 = vcmp.gt.f32.partialorder %v527, 0.0
      %vm560 = vcmp.gt.f32.partialorder %v528, 0.0
      %vm561 = vcmp.gt.f32.partialorder %v529, 0.0
      %vm562 = vcmp.gt.f32.partialorder %v530, 0.0
      %vm563 = vcmp.gt.f32.partialorder %v531, 0.0
      %vm564 = vcmp.gt.f32.partialorder %v532, 0.0
      %vm565 = vcmp.gt.f32.partialorder %v533, 0.0
      %vm566 = vcmp.gt.f32.partialorder %v534, 0.0
      %vm567 = vcmp.gt.f32.partialorder %v535, 0.0
      %vm568 = vcmp.gt.f32.partialorder %v536, 0.0
      %vm569 = vcmp.gt.f32.partialorder %v537, 0.0
      %vm570 = vcmp.gt.f32.partialorder %v538, 0.0
      %vm571 = vcmp.gt.f32.partialorder %v539, 0.0
      %vm572 = vcmp.gt.f32.partialorder %v540, 0.0
      %vm573 = vcmp.gt.f32.partialorder %v541, 0.0
      %vm574 = vcmp.gt.f32.partialorder %v542, 0.0
      %vm575 = vcmp.gt.f32.partialorder %v543, 0.0
      %vm576 = vcmp.gt.f32.partialorder %v544, 0.0
      %vm577 = vcmp.gt.f32.partialorder %v545, 0.0
      %vm578 = vcmp.gt.f32.partialorder %v546, 0.0
      %vm579 = vcmp.gt.f32.partialorder %v547, 0.0
      %vm580 = vcmp.gt.f32.partialorder %v548, 0.0
      %vm581 = vcmp.gt.f32.partialorder %v549, 0.0
      %vm582 = vcmp.gt.f32.partialorder %v550, 0.0
      %vm583 = vcmp.gt.f32.partialorder %v551, 0.0
      %vm584 = vcmp.gt.f32.partialorder %v552, 0.0
      %vm585 = vcmp.gt.f32.partialorder %v553, 0.0
      %v586 = vmul.f32 %v522, 0.1
      %v587 = vmul.f32 %v523, 0.1
      %v588 = vmul.f32 %v524, 0.1
      %v589 = vmul.f32 %v525, 0.1
      %v590 = vmul.f32 %v526, 0.1
      %v591 = vmul.f32 %v527, 0.1
      %v592 = vmul.f32 %v528, 0.1
      %v593 = vmul.f32 %v529, 0.1
      %v594 = vmul.f32 %v530, 0.1
      %v595 = vmul.f32 %v531, 0.1
      %v596 = vmul.f32 %v532, 0.1
      %v597 = vmul.f32 %v533, 0.1
      %v598 = vmul.f32 %v534, 0.1
      %v599 = vmul.f32 %v535, 0.1
      %v600 = vmul.f32 %v536, 0.1
      %v601 = vmul.f32 %v537, 0.1
      %v602 = vmul.f32 %v538, 0.1
      %v603 = vmul.f32 %v539, 0.1
      %v604 = vmul.f32 %v540, 0.1
      %v605 = vmul.f32 %v541, 0.1
      %v606 = vmul.f32 %v542, 0.1
      %v607 = vmul.f32 %v543, 0.1
      %v608 = vmul.f32 %v544, 0.1
      %v609 = vmul.f32 %v545, 0.1
      %v610 = vmul.f32 %v546, 0.1
      %v611 = vmul.f32 %v547, 0.1
      %v612 = vmul.f32 %v548, 0.1
      %v613 = vmul.f32 %v549, 0.1
      %v614 = vmul.f32 %v550, 0.1
      %v615 = vmul.f32 %v551, 0.1
      %v616 = vmul.f32 %v552, 0.1
      %v617 = vmul.f32 %v553, 0.1
      %v618 = vsel %vm554, %v522, %v586
      %v619 = vsel %vm555, %v523, %v587
      %v620 = vsel %vm556, %v524, %v588
      %v621 = vsel %vm557, %v525, %v589
      %v622 = vsel %vm558, %v526, %v590
      %v623 = vsel %vm559, %v527, %v591
      %v624 = vsel %vm560, %v528, %v592
      %v625 = vsel %vm561, %v529, %v593
      %v626 = vsel %vm562, %v530, %v594
      %v627 = vsel %vm563, %v531, %v595
      %v628 = vsel %vm564, %v532, %v596
      %v629 = vsel %vm565, %v533, %v597
      %v630 = vsel %vm566, %v534, %v598
      %v631 = vsel %vm567, %v535, %v599
      %v632 = vsel %vm568, %v536, %v600
      %v633 = vsel %vm569, %v537, %v601
      %v634 = vsel %vm570, %v538, %v602
      %v635 = vsel %vm571, %v539, %v603
      %v636 = vsel %vm572, %v540, %v604
      %v637 = vsel %vm573, %v541, %v605
      %v638 = vsel %vm574, %v542, %v606
      %v639 = vsel %vm575, %v543, %v607
      %v640 = vsel %vm576, %v544, %v608
      %v641 = vsel %vm577, %v545, %v609
      %v642 = vsel %vm578, %v546, %v610
      %v643 = vsel %vm579, %v547, %v611
      %v644 = vsel %vm580, %v548, %v612
      %v645 = vsel %vm581, %v549, %v613
      %v646 = vsel %vm582, %v550, %v614
      %v647 = vsel %vm583, %v551, %v615
      %v648 = vsel %vm584, %v552, %v616
      %v649 = vsel %vm585, %v553, %v617
      %650 = vst [vmem:[%s199] sm:$0xff] %v618
      %651 = vst [vmem:[%s199 + $0x8] sm:$0xff] %v619
      %652 = vst [vmem:[%s199 + $0x10] sm:$0xff] %v620
      %653 = vst [vmem:[%s199 + $0x18] sm:$0xff] %v621
      %654 = vst [vmem:[%s199 + $0x20] sm:$0xff] %v622
      %655 = vst [vmem:[%s199 + $0x28] sm:$0xff] %v623
      %656 = vst [vmem:[%s199 + $0x30] sm:$0xff] %v624
      %657 = vst [vmem:[%s199 + $0x38] sm:$0xff] %v625
      %658 = vst [vmem:[%s199 + $0x40] sm:$0xff] %v626
      %659 = vst [vmem:[%s199 + $0x48] sm:$0xff] %v627
      %660 = vst [vmem:[%s199 + $0x50] sm:$0xff] %v628
      %661 = vst [vmem:[%s199 + $0x58] sm:$0xff] %v629
      %662 = vst [vmem:[%s199 + $0x60] sm:$0xff] %v630
      %663 = vst [vmem:[%s199 + $0x68] sm:$0xff] %v631
      %664 = vst [vmem:[%s199 + $0x70] sm:$0xff] %v632
      %665 = vst [vmem:[%s199 + $0x78] sm:$0xff] %v633
      %666 = vst [vmem:[%s199 + $0x80] sm:$0xff] %v634
      %667 = vst [vmem:[%s199 + $0x88] sm:$0xff] %v635
      %668 = vst [vmem:[%s199 + $0x90] sm:$0xff] %v636
      %669 = vst [vmem:[%s199 + $0x98] sm:$0xff] %v637
      %670 = vst [vmem:[%s199 + $0xa0] sm:$0xff] %v638
      %671 = vst [vmem:[%s199 + $0xa8] sm:$0xff] %v639
      %672 = vst [vmem:[%s199 + $0xb0] sm:$0xff] %v640
      %673 = vst [vmem:[%s199 + $0xb8] sm:$0xff] %v641
      %674 = vst [vmem:[%s199 + $0xc0] sm:$0xff] %v642
      %675 = vst [vmem:[%s199 + $0xc8] sm:$0xff] %v643
      %676 = vst [vmem:[%s199 + $0xd0] sm:$0xff] %v644
      %677 = vst [vmem:[%s199 + $0xd8] sm:$0xff] %v645
      %678 = vst [vmem:[%s199 + $0xe0] sm:$0xff] %v646
      %679 = vst [vmem:[%s199 + $0xe8] sm:$0xff] %v647
      %680 = vst [vmem:[%s199 + $0xf0] sm:$0xff] %v648
      %681 = vst [vmem:[%s199 + $0xf8] sm:$0xff] %v649
      %s682 = smul.u32 32, %s15
      %p683 = scmp.lt.s32.totalorder %s682, 63
      %s684 = scalar_select %p683, %s682, 63
      %s685 = smul.addr %s684, 8
      %s686 = scalar_lea.vmem %s4, %s685
      // Predicated region
      $region37: #{cnn_block_forward.3} parent=35 // pred_check
        %p687 = pneg %p122
      $region38: #{cnn_block_forward.3} parent=35 // pred_check_branch
        %689 = sbr.rel (%p687) target = $region40
      $region39: #{cnn_block_forward.3} parent=35 // pred_region
        %s690 = smul.u32 32, %s15
      $region40: #{cnn_block_forward.3} parent=35 // pred_fallthru
        _
    $region36: #{cnn_block_forward.3} parent=5 // pred_fallthru
      _
    %p691 = scmp.le.s32.totalorder 2, %s10
    // Predicated region
    $region41: #{cnn_block_forward.3} parent=5 // pred_check
      %p692 = pneg %p691
    $region42: #{cnn_block_forward.3} parent=5 // pred_check_branch
      %694 = sbr.rel (%p692) target = $region44
    $region43: #{cnn_block_forward.3} parent=5 // pred_region
      %s695 = ssub.s32 %s10, 2
      // Predicated region
      $region45: #{cnn_block_forward.3} parent=43 // pred_check
        %p696 = pneg %p128
      $region46: #{cnn_block_forward.3} parent=43 // pred_check_branch
        %698 = sbr.rel (%p696) target = $region48
      $region47: #{cnn_block_forward.3} parent=43 // pred_region
        %s699 = smul.u32 32, %s16
        %p700 = scmp.lt.s32.totalorder %s699, 63
        %s701 = scalar_select %p700, %s699, 63
        %s702 = smul.addr %s701, 8
        %s703 = scalar_lea.vmem %s4, %s702
      $region48: #{cnn_block_forward.3} parent=43 // pred_fallthru
        _
    $region44: #{cnn_block_forward.3} parent=5 // pred_fallthru
      _
  $region6: #{cnn_block_forward.3} parent=0 // loop_footer
    %s14 = sadd.s32 1, %s10
  $region7: #{cnn_block_forward.3} parent=0 // loop_footer_branch
    %9 = sbr.rel target = $region3
  $region8: #{cnn_block_forward.3} parent=0 // loop_exit
    _

// kernel: cnn_block_forward.2
$region0: #{cnn_block_forward.2}
  #allocation0 [shape = 'u32[]', space=smem, size = 0x4, offset = 0x4, fixed_abs, tag = 'smem constant byte address 0x4 - core index']
  #allocation1 [shape = 'u32[72,128]{1,0:T(1,128)}', space=vmem, size = 0x9000, scoped, tag = 'internal scratch']
  #allocation2 [shape = 'f32[1,128]{1,0:T(1,128)}', space=vmem, size = 0x200, scoped, tag = 'scratch operand']
  #allocation3 [shape = 'f32[1,128]{1,0:T(1,128)}', space=vmem, size = 0x200, scoped, tag = 'scratch operand']
  %s0 = inlined_call_operand.vmem [shape: bf16[512,128], index: 0, kind: input, shape index: {}]
  %s1 = inlined_call_operand.vmem [shape: bf16[128,128], index: 1, kind: input, shape index: {}]
  %s2 = inlined_call_operand.vmem [shape: f32[1,128], index: 2, kind: input, shape index: {}]
  %s3 = inlined_call_operand.vmem [shape: f32[1,128], index: 3, kind: input, shape index: {}]
  %s4 = inlined_call_operand.vmem [shape: f32[1,128], index: 4, kind: output, shape index: {0}]
  %s5 = inlined_call_operand.vmem [shape: f32[1,128], index: 5, kind: output, shape index: {1}]
  %6 = xla_tuple %s4, %s5
  %s7 = sld [smem:[#allocation0]]
  $region65: #{cnn_block_forward.2} parent=0
    _
  %s9 = ssub.s32 1, %s7
  %s10 = scalar_select 0, %s9, %s7
  loop: start=0, step=1, limit=4
  $region2: #{cnn_block_forward.2} parent=0 // loop_pre_header
    _
  $region3: #{cnn_block_forward.2} parent=0 // loop_header
    %s12 = sphi 0, %s16
    %p13 = scmp.ge.s32.totalorder %s12, 4
    %s22 = sphi 0, %s24
    %s25 = sphi 0, %s22
    %s26 = sphi 0, %s25
    %s42 = sphi 0, %s26
    %s46 = sphi 0, %s46
    %s48 = sphi 0, %s46
    %s49 = sphi 0, %s48
    %s63 = sphi 0, %s49
    %s67 = sphi 0, %s67
    %s69 = sphi 0, %s67
    %s70 = sphi 0, %s69
    %s84 = sphi 0, %s70
    %s88 = sphi 0, %s88
    %s90 = sphi 0, %s88
    %s91 = sphi 0, %s90
    %s105 = sphi 0, %s91
    %s109 = sphi 0, %s109
    %s111 = sphi 0, %s109
    %s112 = sphi 0, %s111
    %s126 = sphi 0, %s112
    %s130 = sphi 0, %s130
    %s132 = sphi 0, %s130
    %s133 = sphi 0, %s132
    %s147 = sphi 0, %s133
  $region4: #{cnn_block_forward.2} parent=0 // loop_header_branch
    %15 = sbr.rel (%p13) target = $region8
  $region5: #{cnn_block_forward.2} parent=0 // loop_body
    %s17 = ssub.s32 %s12, 1
    %s18 = ssub.s32 %s12, 2
    %s19 = sadd.s32 %s12, 1
    %s20 = ssub.s32 %s12, %s19
    %p21 = scmp.eq.s32.totalorder %s20, 0
    %s23 = sadd.s32 %s22, 1
    %s24 = scalar_select %p21, %s22, %s23
    %p27 = pneg %p21
    %p28 = scmp.eq.s32.totalorder %s12, 1
    %p29 = por %p27, %p28
    %p30 = scmp.ne.s32.totalorder %s22, %s25
    %p31 = scmp.eq.s32.totalorder %s12, 0
    %p32 = por %p30, %p31
    %p33 = scmp.ne.s32.totalorder %s22, %s25
    %p34 = scmp.eq.s32.totalorder %s17, 1
    %p35 = por %p33, %p34
    %p36 = scmp.ne.s32.totalorder %s25, %s26
    %p37 = scmp.eq.s32.totalorder %s17, 0
    %p38 = por %p36, %p37
    %p39 = scmp.ne.s32.totalorder %s25, %s26
    %p40 = scmp.eq.s32.totalorder %s18, 1
    %p41 = por %p39, %p40
    %p43 = scmp.ne.s32.totalorder %s26, %s42
    %p44 = scmp.eq.s32.totalorder %s18, 0
    %p45 = por %p43, %p44
    %s47 = sadd.s32 %s46, 1
    %p50 = scmp.eq.s32.totalorder %s12, 1
    %p51 = scmp.ne.s32.totalorder %s46, %s48
    %p52 = scmp.eq.s32.totalorder %s12, 0
    %p53 = por %p51, %p52
    %p54 = scmp.ne.s32.totalorder %s46, %s48
    %p55 = scmp.eq.s32.totalorder %s17, 1
    %p56 = por %p54, %p55
    %p57 = scmp.ne.s32.totalorder %s48, %s49
    %p58 = scmp.eq.s32.totalorder %s17, 0
    %p59 = por %p57, %p58
    %p60 = scmp.ne.s32.totalorder %s48, %s49
    %p61 = scmp.eq.s32.totalorder %s18, 1
    %p62 = por %p60, %p61
    %p64 = scmp.ne.s32.totalorder %s49, %s63
    %p65 = scmp.eq.s32.totalorder %s18, 0
    %p66 = por %p64, %p65
    %s68 = sadd.s32 %s67, 1
    %p71 = scmp.eq.s32.totalorder %s12, 1
    %p72 = scmp.ne.s32.totalorder %s67, %s69
    %p73 = scmp.eq.s32.totalorder %s12, 0
    %p74 = por %p72, %p73
    %p75 = scmp.ne.s32.totalorder %s67, %s69
    %p76 = scmp.eq.s32.totalorder %s17, 1
    %p77 = por %p75, %p76
    %p78 = scmp.ne.s32.totalorder %s69, %s70
    %p79 = scmp.eq.s32.totalorder %s17, 0
    %p80 = por %p78, %p79
    %p81 = scmp.ne.s32.totalorder %s69, %s70
    %p82 = scmp.eq.s32.totalorder %s18, 1
    %p83 = por %p81, %p82
    %p85 = scmp.ne.s32.totalorder %s70, %s84
    %p86 = scmp.eq.s32.totalorder %s18, 0
    %p87 = por %p85, %p86
    %s89 = sadd.s32 %s88, 1
    %p92 = scmp.eq.s32.totalorder %s12, 1
    %p93 = scmp.ne.s32.totalorder %s88, %s90
    %p94 = scmp.eq.s32.totalorder %s12, 0
    %p95 = por %p93, %p94
    %p96 = scmp.ne.s32.totalorder %s88, %s90
    %p97 = scmp.eq.s32.totalorder %s17, 1
    %p98 = por %p96, %p97
    %p99 = scmp.ne.s32.totalorder %s90, %s91
    %p100 = scmp.eq.s32.totalorder %s17, 0
    %p101 = por %p99, %p100
    %p102 = scmp.ne.s32.totalorder %s90, %s91
    %p103 = scmp.eq.s32.totalorder %s18, 1
    %p104 = por %p102, %p103
    %p106 = scmp.ne.s32.totalorder %s91, %s105
    %p107 = scmp.eq.s32.totalorder %s18, 0
    %p108 = por %p106, %p107
    %s110 = sadd.s32 %s109, 1
    %p113 = scmp.eq.s32.totalorder %s12, 1
    %p114 = scmp.ne.s32.totalorder %s109, %s111
    %p115 = scmp.eq.s32.totalorder %s12, 0
    %p116 = por %p114, %p115
    %p117 = scmp.ne.s32.totalorder %s109, %s111
    %p118 = scmp.eq.s32.totalorder %s17, 1
    %p119 = por %p117, %p118
    %p120 = scmp.ne.s32.totalorder %s111, %s112
    %p121 = scmp.eq.s32.totalorder %s17, 0
    %p122 = por %p120, %p121
    %p123 = scmp.ne.s32.totalorder %s111, %s112
    %p124 = scmp.eq.s32.totalorder %s18, 1
    %p125 = por %p123, %p124
    %p127 = scmp.ne.s32.totalorder %s112, %s126
    %p128 = scmp.eq.s32.totalorder %s18, 0
    %p129 = por %p127, %p128
    %s131 = sadd.s32 %s130, 1
    %p134 = scmp.eq.s32.totalorder %s12, 1
    %p135 = scmp.ne.s32.totalorder %s130, %s132
    %p136 = scmp.eq.s32.totalorder %s12, 0
    %p137 = por %p135, %p136
    %p138 = scmp.ne.s32.totalorder %s130, %s132
    %p139 = scmp.eq.s32.totalorder %s17, 1
    %p140 = por %p138, %p139
    %p141 = scmp.ne.s32.totalorder %s132, %s133
    %p142 = scmp.eq.s32.totalorder %s17, 0
    %p143 = por %p141, %p142
    %p144 = scmp.ne.s32.totalorder %s132, %s133
    %p145 = scmp.eq.s32.totalorder %s18, 1
    %p146 = por %p144, %p145
    %p148 = scmp.ne.s32.totalorder %s133, %s147
    %p149 = scmp.eq.s32.totalorder %s18, 0
    %p150 = por %p148, %p149
    %p151 = scmp.le.s32.totalorder 1, %s12
    %p152 = scmp.lt.s32.totalorder %s12, 3
    %p153 = pnand %p151, %p152
    %p154 = pneg %p153
    // Predicated region
    $region9: #{cnn_block_forward.2} parent=5 // pred_check
      _
    $region10: #{cnn_block_forward.2} parent=5 // pred_check_branch
      %156 = sbr.rel (%p153) target = $region12
    $region11: #{cnn_block_forward.2} parent=5 // pred_region
      %s157 = ssub.s32 %s12, 1
      // Predicated region
      $region13: #{cnn_block_forward.2} parent=11 // pred_check
        %p158 = pneg %p59
      $region14: #{cnn_block_forward.2} parent=11 // pred_check_branch
        %160 = sbr.rel (%p158) target = $region16
      $region15: #{cnn_block_forward.2} parent=11 // pred_region
        _
      $region16: #{cnn_block_forward.2} parent=11 // pred_fallthru
        _
      // Predicated region
      $region17: #{cnn_block_forward.2} parent=11 // pred_check
        %p161 = pneg %p80
      $region18: #{cnn_block_forward.2} parent=11 // pred_check_branch
        %163 = sbr.rel (%p161) target = $region20
      $region19: #{cnn_block_forward.2} parent=11 // pred_region
        _
      $region20: #{cnn_block_forward.2} parent=11 // pred_fallthru
        _
      // Predicated region
      $region21: #{cnn_block_forward.2} parent=11 // pred_check
        %p164 = pneg %p101
      $region22: #{cnn_block_forward.2} parent=11 // pred_check_branch
        %166 = sbr.rel (%p164) target = $region24
      $region23: #{cnn_block_forward.2} parent=11 // pred_region
        _
      $region24: #{cnn_block_forward.2} parent=11 // pred_fallthru
        _
    $region12: #{cnn_block_forward.2} parent=5 // pred_fallthru
      _
    %p167 = scmp.lt.s32.totalorder %s12, 2
    // Predicated region
    $region25: #{cnn_block_forward.2} parent=5 // pred_check
      %p168 = pneg %p167
    $region26: #{cnn_block_forward.2} parent=5 // pred_check_branch
      %170 = sbr.rel (%p168) target = $region28
    $region27: #{cnn_block_forward.2} parent=5 // pred_region
      // Predicated region
      $region29: #{cnn_block_forward.2} parent=27 // pred_check
        %p171 = pneg %p32
      $region30: #{cnn_block_forward.2} parent=27 // pred_check_branch
        %173 = sbr.rel (%p171) target = $region32
      $region31: #{cnn_block_forward.2} parent=27 // pred_region
        %s174 = smul.u32 32, %s12
        %p175 = scmp.lt.s32.totalorder %s174, 63
        %s176 = scalar_select %p175, %s174, 63
        %s177 = smul.addr %s176, 4
        %s178 = scalar_lea.vmem %s0, %s177
        %s179 = smul.u32 32, %s12
      $region32: #{cnn_block_forward.2} parent=27 // pred_fallthru
        _
    $region28: #{cnn_block_forward.2} parent=5 // pred_fallthru
      _
    %p180 = scmp.le.s32.totalorder 1, %s12
    %p181 = scmp.lt.s32.totalorder %s12, 3
    %p182 = pnand %p180, %p181
    %p183 = pneg %p182
    // Predicated region
    $region33: #{cnn_block_forward.2} parent=5 // pred_check
      _
    $region34: #{cnn_block_forward.2} parent=5 // pred_check_branch
      %185 = sbr.rel (%p182) target = $region36
    $region35: #{cnn_block_forward.2} parent=5 // pred_region
      %s186 = ssub.s32 %s12, 1
      %s187 = smul.u32 32, %s17
      %p188 = scmp.lt.s32.totalorder %s187, 63
      %s189 = scalar_select %p188, %s187, 63
      %s190 = smul.addr %s189, 4
      %s191 = scalar_lea.vmem %s0, %s190
      %p192 = pneg %p38
      %p193 = pneg %p35
      %p194 = pneg %p59
      %p195 = pneg %p56
      %p196 = pneg %p80
      %p197 = pneg %p77
      %p198 = pneg %p101
      %p199 = pneg %p98
      %p200 = pneg %p122
      %p201 = pneg %p119
      %p202 = pneg %p143
      %p203 = pneg %p140
      %s204 = smul.u32 32, %s17
      %p205 = scmp.lt.s32.totalorder %s204, 63
      %s206 = scalar_select %p205, %s204, 63
      %s207 = smul.addr %s206, 4
      %s208 = scalar_lea.vmem %s0, %s207
      %s209 = smul.u32 32, %s17
      %p210 = scmp.eq.s32.totalorder %s17, 0
      // Predicated region
      $region37: #{cnn_block_forward.2} parent=35 // pred_check
        %p211 = pneg %p210
      $region38: #{cnn_block_forward.2} parent=35 // pred_check_branch
        %213 = sbr.rel (%p211) target = $region40
      $region39: #{cnn_block_forward.2} parent=35 // pred_region
        %214 = vst [vmem:[#allocation2] sm:$0x1] 0.0
        %215 = vst [vmem:[#allocation3] sm:$0x1] 0.0
        %216 = vst [vmem:[%s4] sm:$0x1] 0.0
        %217 = vst [vmem:[%s5] sm:$0x1] 0.0
      $region40: #{cnn_block_forward.2} parent=35 // pred_fallthru
        _
      %v218 = vld [vmem:[%s208] sm:$0xf]
      %v219 = vld [vmem:[%s208 + $0x4] sm:$0xf]
      %v220 = vld [vmem:[%s208 + $0x8] sm:$0xf]
      %v221 = vld [vmem:[%s208 + $0xc] sm:$0xf]
      %v222 = vld [vmem:[%s208 + $0x10] sm:$0xf]
      %v223 = vld [vmem:[%s208 + $0x14] sm:$0xf]
      %v224 = vld [vmem:[%s208 + $0x18] sm:$0xf]
      %v225 = vld [vmem:[%s208 + $0x1c] sm:$0xf]
      %v226 = vld [vmem:[%s208 + $0x20] sm:$0xf]
      %v227 = vld [vmem:[%s208 + $0x24] sm:$0xf]
      %v228 = vld [vmem:[%s208 + $0x28] sm:$0xf]
      %v229 = vld [vmem:[%s208 + $0x2c] sm:$0xf]
      %v230 = vld [vmem:[%s208 + $0x30] sm:$0xf]
      %v231 = vld [vmem:[%s208 + $0x34] sm:$0xf]
      %v232 = vld [vmem:[%s208 + $0x38] sm:$0xf]
      %v233 = vld [vmem:[%s208 + $0x3c] sm:$0xf]
      %v234 = vld [vmem:[%s208 + $0x40] sm:$0xf]
      %v235 = vld [vmem:[%s208 + $0x44] sm:$0xf]
      %v236 = vld [vmem:[%s208 + $0x48] sm:$0xf]
      %v237 = vld [vmem:[%s208 + $0x4c] sm:$0xf]
      %v238 = vld [vmem:[%s208 + $0x50] sm:$0xf]
      %v239 = vld [vmem:[%s208 + $0x54] sm:$0xf]
      %v240 = vld [vmem:[%s208 + $0x58] sm:$0xf]
      %v241 = vld [vmem:[%s208 + $0x5c] sm:$0xf]
      %v242 = vld [vmem:[%s208 + $0x60] sm:$0xf]
      %v243 = vld [vmem:[%s208 + $0x64] sm:$0xf]
      %v244 = vld [vmem:[%s208 + $0x68] sm:$0xf]
      %v245 = vld [vmem:[%s208 + $0x6c] sm:$0xf]
      %v246 = vld [vmem:[%s208 + $0x70] sm:$0xf]
      %v247 = vld [vmem:[%s208 + $0x74] sm:$0xf]
      %v248 = vld [vmem:[%s208 + $0x78] sm:$0xf]
      %v249 = vld [vmem:[%s208 + $0x7c] sm:$0xf]
      %v250 = vld [vmem:[%s1] sm:$0xf]
      %v251 = vld [vmem:[%s1 + $0x4] sm:$0xf]
      %v252 = vld [vmem:[%s1 + $0x8] sm:$0xf]
      %v253 = vld [vmem:[%s1 + $0xc] sm:$0xf]
      %v254 = vld [vmem:[%s1 + $0x10] sm:$0xf]
      %v255 = vld [vmem:[%s1 + $0x14] sm:$0xf]
      %v256 = vld [vmem:[%s1 + $0x18] sm:$0xf]
      %v257 = vld [vmem:[%s1 + $0x1c] sm:$0xf]
      %v258 = vld [vmem:[%s1 + $0x20] sm:$0xf]
      %v259 = vld [vmem:[%s1 + $0x24] sm:$0xf]
      %v260 = vld [vmem:[%s1 + $0x28] sm:$0xf]
      %v261 = vld [vmem:[%s1 + $0x2c] sm:$0xf]
      %v262 = vld [vmem:[%s1 + $0x30] sm:$0xf]
      %v263 = vld [vmem:[%s1 + $0x34] sm:$0xf]
      %v264 = vld [vmem:[%s1 + $0x38] sm:$0xf]
      %v265 = vld [vmem:[%s1 + $0x3c] sm:$0xf]
      %v298 = vunpack.c.l.b16 %v218
      %v299 = vunpack.c.l.b16 %v219
      %v300 = vunpack.c.l.b16 %v220
      %v301 = vunpack.c.l.b16 %v221
      %v302 = vunpack.c.l.b16 %v222
      %v303 = vunpack.c.l.b16 %v223
      %v304 = vunpack.c.l.b16 %v224
      %v305 = vunpack.c.l.b16 %v225
      %v306 = vunpack.c.l.b16 %v226
      %v307 = vunpack.c.l.b16 %v227
      %v308 = vunpack.c.l.b16 %v228
      %v309 = vunpack.c.l.b16 %v229
      %v310 = vunpack.c.l.b16 %v230
      %v311 = vunpack.c.l.b16 %v231
      %v312 = vunpack.c.l.b16 %v232
      %v313 = vunpack.c.l.b16 %v233
      %v314 = vunpack.c.l.b16 %v234
      %v315 = vunpack.c.l.b16 %v235
      %v316 = vunpack.c.l.b16 %v236
      %v317 = vunpack.c.l.b16 %v237
      %v318 = vunpack.c.l.b16 %v238
      %v319 = vunpack.c.l.b16 %v239
      %v320 = vunpack.c.l.b16 %v240
      %v321 = vunpack.c.l.b16 %v241
      %v322 = vunpack.c.l.b16 %v242
      %v323 = vunpack.c.l.b16 %v243
      %v324 = vunpack.c.l.b16 %v244
      %v325 = vunpack.c.l.b16 %v245
      %v326 = vunpack.c.l.b16 %v246
      %v327 = vunpack.c.l.b16 %v247
      %v328 = vunpack.c.l.b16 %v248
      %v329 = vunpack.c.l.b16 %v249
      %v330 = vpack.c.b16 %v299, %v298
      %v331 = vpack.c.b16 %v301, %v300
      %v332 = vpack.c.b16 %v303, %v302
      %v333 = vpack.c.b16 %v305, %v304
      %v334 = vpack.c.b16 %v307, %v306
      %v335 = vpack.c.b16 %v309, %v308
      %v336 = vpack.c.b16 %v311, %v310
      %v337 = vpack.c.b16 %v313, %v312
      %v338 = vpack.c.b16 %v315, %v314
      %v339 = vpack.c.b16 %v317, %v316
      %v340 = vpack.c.b16 %v319, %v318
      %v341 = vpack.c.b16 %v321, %v320
      %v342 = vpack.c.b16 %v323, %v322
      %v343 = vpack.c.b16 %v325, %v324
      %v344 = vpack.c.b16 %v327, %v326
      %v345 = vpack.c.b16 %v329, %v328
      %v378 = vunpack.c.l.b16 %v250
      %v379 = vunpack.c.l.b16 %v251
      %v380 = vunpack.c.l.b16 %v252
      %v381 = vunpack.c.l.b16 %v253
      %v382 = vunpack.c.l.b16 %v254
      %v383 = vunpack.c.l.b16 %v255
      %v384 = vunpack.c.l.b16 %v256
      %v385 = vunpack.c.l.b16 %v257
      %v386 = vunpack.c.l.b16 %v258
      %v387 = vunpack.c.l.b16 %v259
      %v388 = vunpack.c.l.b16 %v260
      %v389 = vunpack.c.l.b16 %v261
      %v390 = vunpack.c.l.b16 %v262
      %v391 = vunpack.c.l.b16 %v263
      %v392 = vunpack.c.l.b16 %v264
      %v393 = vunpack.c.l.b16 %v265
      %v394 = vpack.c.b16 %v379, %v378
      %v395 = vpack.c.b16 %v381, %v380
      %v396 = vpack.c.b16 %v383, %v382
      %v397 = vpack.c.b16 %v385, %v384
      %v398 = vpack.c.b16 %v387, %v386
      %v399 = vpack.c.b16 %v389, %v388
      %v400 = vpack.c.b16 %v391, %v390
      %v401 = vpack.c.b16 %v393, %v392
      %410 = vmatpush.bf16.msra.mxu0 %v401
      %411 = vmatpush.bf16.msra.mxu0 %v400
      %412 = vmatpush.bf16.msra.mxu0 %v399
      %413 = vmatpush.bf16.msra.mxu0 %v398
      %414 = vmatpush.bf16.msra.mxu0 %v397
      %415 = vmatpush.bf16.msra.mxu0 %v396
      %416 = vmatpush.bf16.msra.mxu0 %v395
      %417 = vmatpush.bf16.msra.mxu0 %v394
      %418 = vmatmul.bf16.gmra.mxu0 %v330
      %v419 = vpop.f32.mrf.mxu0
      %v420 = vadd.f32 0.0, %v419
      %v421 = vpop.f32.mrf.mxu0
      %v422 = vadd.f32 0.0, %v421
      %423 = vmatmul.bf16.gmra.mxu0 %v331
      %v424 = vpop.f32.mrf.mxu0
      %v425 = vadd.f32 0.0, %v424
      %v426 = vpop.f32.mrf.mxu0
      %v427 = vadd.f32 0.0, %v426
      %428 = vmatmul.bf16.gmra.mxu0 %v332
      %v429 = vpop.f32.mrf.mxu0
      %v430 = vadd.f32 0.0, %v429
      %v431 = vpop.f32.mrf.mxu0
      %v432 = vadd.f32 0.0, %v431
      %433 = vmatmul.bf16.gmra.mxu0 %v333
      %v434 = vpop.f32.mrf.mxu0
      %v435 = vadd.f32 0.0, %v434
      %v436 = vpop.f32.mrf.mxu0
      %v437 = vadd.f32 0.0, %v436
      %438 = vmatmul.bf16.gmra.mxu0 %v334
      %v439 = vpop.f32.mrf.mxu0
      %v440 = vadd.f32 0.0, %v439
      %v441 = vpop.f32.mrf.mxu0
      %v442 = vadd.f32 0.0, %v441
      %443 = vmatmul.bf16.gmra.mxu0 %v335
      %v444 = vpop.f32.mrf.mxu0
      %v445 = vadd.f32 0.0, %v444
      %v446 = vpop.f32.mrf.mxu0
      %v447 = vadd.f32 0.0, %v446
      %448 = vmatmul.bf16.gmra.mxu0 %v336
      %v449 = vpop.f32.mrf.mxu0
      %v450 = vadd.f32 0.0, %v449
      %v451 = vpop.f32.mrf.mxu0
      %v452 = vadd.f32 0.0, %v451
      %453 = vmatmul.bf16.gmra.mxu0 %v337
      %v454 = vpop.f32.mrf.mxu0
      %v455 = vadd.f32 0.0, %v454
      %v456 = vpop.f32.mrf.mxu0
      %v457 = vadd.f32 0.0, %v456
      %458 = vmatmul.bf16.gmra.mxu0 %v338
      %v459 = vpop.f32.mrf.mxu0
      %v460 = vadd.f32 0.0, %v459
      %v461 = vpop.f32.mrf.mxu0
      %v462 = vadd.f32 0.0, %v461
      %463 = vmatmul.bf16.gmra.mxu0 %v339
      %v464 = vpop.f32.mrf.mxu0
      %v465 = vadd.f32 0.0, %v464
      %v466 = vpop.f32.mrf.mxu0
      %v467 = vadd.f32 0.0, %v466
      %468 = vmatmul.bf16.gmra.mxu0 %v340
      %v469 = vpop.f32.mrf.mxu0
      %v470 = vadd.f32 0.0, %v469
      %v471 = vpop.f32.mrf.mxu0
      %v472 = vadd.f32 0.0, %v471
      %473 = vmatmul.bf16.gmra.mxu0 %v341
      %v474 = vpop.f32.mrf.mxu0
      %v475 = vadd.f32 0.0, %v474
      %v476 = vpop.f32.mrf.mxu0
      %v477 = vadd.f32 0.0, %v476
      %478 = vmatmul.bf16.gmra.mxu0 %v342
      %v479 = vpop.f32.mrf.mxu0
      %v480 = vadd.f32 0.0, %v479
      %v481 = vpop.f32.mrf.mxu0
      %v482 = vadd.f32 0.0, %v481
      %483 = vmatmul.bf16.gmra.mxu0 %v343
      %v484 = vpop.f32.mrf.mxu0
      %v485 = vadd.f32 0.0, %v484
      %v486 = vpop.f32.mrf.mxu0
      %v487 = vadd.f32 0.0, %v486
      %488 = vmatmul.bf16.gmra.mxu0 %v344
      %v489 = vpop.f32.mrf.mxu0
      %v490 = vadd.f32 0.0, %v489
      %v491 = vpop.f32.mrf.mxu0
      %v492 = vadd.f32 0.0, %v491
      %493 = vmatmul.bf16.gmra.mxu0 %v345
      %v494 = vpop.f32.mrf.mxu0
      %v495 = vadd.f32 0.0, %v494
      %v496 = vpop.f32.mrf.mxu0
      %v497 = vadd.f32 0.0, %v496
      %498 = vdwg.mxu0
      %v499 = vld [vmem:[#allocation2] sm:$0x1]
      %500 = vmatpush.msra.mxu0 %v457
      %501 = vmatpush.msra.mxu0 %v455
      %502 = vmatpush.msra.mxu0 %v452
      %503 = vmatpush.msra.mxu0 %v450
      %504 = vmatpush.msra.mxu0 %v447
      %505 = vmatpush.msra.mxu0 %v445
      %506 = vmatpush.msra.mxu0 %v442
      %507 = vmatpush.msra.mxu0 %v440
      %508 = vmatpush.msra.mxu0 %v437
      %509 = vmatpush.msra.mxu0 %v435
      %510 = vmatpush.msra.mxu0 %v432
      %511 = vmatpush.msra.mxu0 %v430
      %512 = vmatpush.msra.mxu0 %v427
      %513 = vmatpush.msra.mxu0 %v425
      %514 = vmatpush.msra.mxu0 %v422
      %515 = vmatpush.msra.mxu0 %v420
      %516 = vmatmul.f32.gmra.mxu0 1.0
      %v517 = vpop.f32.mrf.mxu0
      %v518 = vadd.f32 0.0, %v517
      %519 = vdwg.mxu0
      %520 = vmatpush.msra.mxu0 %v497
      %521 = vmatpush.msra.mxu0 %v495
      %522 = vmatpush.msra.mxu0 %v492
      %523 = vmatpush.msra.mxu0 %v490
      %524 = vmatpush.msra.mxu0 %v487
      %525 = vmatpush.msra.mxu0 %v485
      %526 = vmatpush.msra.mxu0 %v482
      %527 = vmatpush.msra.mxu0 %v480
      %528 = vmatpush.msra.mxu0 %v477
      %529 = vmatpush.msra.mxu0 %v475
      %530 = vmatpush.msra.mxu0 %v472
      %531 = vmatpush.msra.mxu0 %v470
      %532 = vmatpush.msra.mxu0 %v467
      %533 = vmatpush.msra.mxu0 %v465
      %534 = vmatpush.msra.mxu0 %v462
      %535 = vmatpush.msra.mxu0 %v460
      %536 = vmatmul.f32.gmra.mxu0 1.0
      %v537 = vpop.f32.mrf.mxu0
      %v538 = vadd.f32 %v518, %v537
      %539 = vdwg.mxu0
      %v540 = vadd.f32 %v499, %v538
      %541 = vst [vmem:[#allocation2] sm:$0x1] %v540
      %v542 = vld [vmem:[#allocation3] sm:$0x1]
      %v543 = vmul.f32 %v420, %v420
      %v544 = vmul.f32 %v422, %v422
      %v545 = vmul.f32 %v425, %v425
      %v546 = vmul.f32 %v427, %v427
      %v547 = vmul.f32 %v430, %v430
      %v548 = vmul.f32 %v432, %v432
      %v549 = vmul.f32 %v435, %v435
      %v550 = vmul.f32 %v437, %v437
      %v551 = vmul.f32 %v440, %v440
      %v552 = vmul.f32 %v442, %v442
      %v553 = vmul.f32 %v445, %v445
      %v554 = vmul.f32 %v447, %v447
      %v555 = vmul.f32 %v450, %v450
      %v556 = vmul.f32 %v452, %v452
      %v557 = vmul.f32 %v455, %v455
      %v558 = vmul.f32 %v457, %v457
      %v559 = vmul.f32 %v460, %v460
      %v560 = vmul.f32 %v462, %v462
      %v561 = vmul.f32 %v465, %v465
      %v562 = vmul.f32 %v467, %v467
      %v563 = vmul.f32 %v470, %v470
      %v564 = vmul.f32 %v472, %v472
      %v565 = vmul.f32 %v475, %v475
      %v566 = vmul.f32 %v477, %v477
      %v567 = vmul.f32 %v480, %v480
      %v568 = vmul.f32 %v482, %v482
      %v569 = vmul.f32 %v485, %v485
      %v570 = vmul.f32 %v487, %v487
      %v571 = vmul.f32 %v490, %v490
      %v572 = vmul.f32 %v492, %v492
      %v573 = vmul.f32 %v495, %v495
      %v574 = vmul.f32 %v497, %v497
      %575 = vmatpush.msra.mxu0 %v558
      %576 = vmatpush.msra.mxu0 %v557
      %577 = vmatpush.msra.mxu0 %v556
      %578 = vmatpush.msra.mxu0 %v555
      %579 = vmatpush.msra.mxu0 %v554
      %580 = vmatpush.msra.mxu0 %v553
      %581 = vmatpush.msra.mxu0 %v552
      %582 = vmatpush.msra.mxu0 %v551
      %583 = vmatpush.msra.mxu0 %v550
      %584 = vmatpush.msra.mxu0 %v549
      %585 = vmatpush.msra.mxu0 %v548
      %586 = vmatpush.msra.mxu0 %v547
      %587 = vmatpush.msra.mxu0 %v546
      %588 = vmatpush.msra.mxu0 %v545
      %589 = vmatpush.msra.mxu0 %v544
      %590 = vmatpush.msra.mxu0 %v543
      %591 = vmatmul.f32.gmra.mxu0 1.0
      %v592 = vpop.f32.mrf.mxu0
      %v593 = vadd.f32 0.0, %v592
      %594 = vdwg.mxu0
      %595 = vmatpush.msra.mxu0 %v574
      %596 = vmatpush.msra.mxu0 %v573
      %597 = vmatpush.msra.mxu0 %v572
      %598 = vmatpush.msra.mxu0 %v571
      %599 = vmatpush.msra.mxu0 %v570
      %600 = vmatpush.msra.mxu0 %v569
      %601 = vmatpush.msra.mxu0 %v568
      %602 = vmatpush.msra.mxu0 %v567
      %603 = vmatpush.msra.mxu0 %v566
      %604 = vmatpush.msra.mxu0 %v565
      %605 = vmatpush.msra.mxu0 %v564
      %606 = vmatpush.msra.mxu0 %v563
      %607 = vmatpush.msra.mxu0 %v562
      %608 = vmatpush.msra.mxu0 %v561
      %609 = vmatpush.msra.mxu0 %v560
      %610 = vmatpush.msra.mxu0 %v559
      %611 = vmatmul.f32.gmra.mxu0 1.0
      %v612 = vpop.f32.mrf.mxu0
      %v613 = vadd.f32 %v593, %v612
      %614 = vdwg.mxu0
      %v615 = vadd.f32 %v542, %v613
      %616 = vst [vmem:[#allocation3] sm:$0x1] %v615
      %p617 = scmp.eq.s32.totalorder %s17, 1
      // Predicated region
      $region41: #{cnn_block_forward.2} parent=35 // pred_check
        %p618 = pneg %p617
      $region42: #{cnn_block_forward.2} parent=35 // pred_check_branch
        %620 = sbr.rel (%p618) target = $region44
      $region43: #{cnn_block_forward.2} parent=35 // pred_region
        %v621 = vld [vmem:[#allocation2] sm:$0x1]
        %v622 = vmul.f32 %v621, 0.001953125
        %v623 = vld [vmem:[#allocation3] sm:$0x1]
        %v624 = vmul.f32 %v623, 0.001953125
        %v625 = vmul.f32 %v622, %v622
        %v626 = vsub.f32 %v624, %v625
        %v627 = vmax.f32 %v626, 0.0
        %v628 = vld [vmem:[%s2] sm:$0x1]
        %v629 = vadd.f32 %v627, 1e-05
        %v630 = vrsqrt.pop %v629
        %v631 = vmul.f32 %v630, %v629
        %v632 = vmul.f32 %v631, %v630
        %v633 = vmul.f32 0.5, %v632
        %v634 = vsub.f32 1.5, %v633
        %v635 = vmul.f32 %v630, %v634
        %vm636 = vweird.f32 %v629
        %vm637 = vweird.f32 %v630
        %vm638 = vmor %vm636, %vm637
        %v639 = vsel %vm638, %v630, %v635
        %v640 = vmul.f32 %v628, %v639
        %641 = vst [vmem:[%s4] sm:$0x1] %v640
        %v642 = vld [vmem:[%s3] sm:$0x1]
        %v643 = vmul.f32 %v622, %v640
        %v644 = vsub.f32 %v642, %v643
        %645 = vst [vmem:[%s5] sm:$0x1] %v644
      $region44: #{cnn_block_forward.2} parent=35 // pred_fallthru
        _
      // Predicated region
      $region45: #{cnn_block_forward.2} parent=35 // pred_check
        %p646 = pneg %p119
      $region46: #{cnn_block_forward.2} parent=35 // pred_check_branch
        %648 = sbr.rel (%p646) target = $region48
      $region47: #{cnn_block_forward.2} parent=35 // pred_region
        _
      $region48: #{cnn_block_forward.2} parent=35 // pred_fallthru
        _
      // Predicated region
      $region49: #{cnn_block_forward.2} parent=35 // pred_check
        %p649 = pneg %p140
      $region50: #{cnn_block_forward.2} parent=35 // pred_check_branch
        %651 = sbr.rel (%p649) target = $region52
      $region51: #{cnn_block_forward.2} parent=35 // pred_region
        _
      $region52: #{cnn_block_forward.2} parent=35 // pred_fallthru
        _
      // Predicated region
      $region53: #{cnn_block_forward.2} parent=35 // pred_check
        %p652 = pneg %p119
      $region54: #{cnn_block_forward.2} parent=35 // pred_check_branch
        %654 = sbr.rel (%p652) target = $region56
      $region55: #{cnn_block_forward.2} parent=35 // pred_region
        _
      $region56: #{cnn_block_forward.2} parent=35 // pred_fallthru
        _
      // Predicated region
      $region57: #{cnn_block_forward.2} parent=35 // pred_check
        %p655 = pneg %p140
      $region58: #{cnn_block_forward.2} parent=35 // pred_check_branch
        %657 = sbr.rel (%p655) target = $region60
      $region59: #{cnn_block_forward.2} parent=35 // pred_region
        _
      $region60: #{cnn_block_forward.2} parent=35 // pred_fallthru
        _
    $region36: #{cnn_block_forward.2} parent=5 // pred_fallthru
      _
    %p658 = scmp.le.s32.totalorder 2, %s12
    // Predicated region
    $region61: #{cnn_block_forward.2} parent=5 // pred_check
      %p659 = pneg %p658
    $region62: #{cnn_block_forward.2} parent=5 // pred_check_branch
      %661 = sbr.rel (%p659) target = $region64
    $region63: #{cnn_block_forward.2} parent=5 // pred_region
      %s662 = ssub.s32 %s12, 2
    $region64: #{cnn_block_forward.2} parent=5 // pred_fallthru
      _
  $region6: #{cnn_block_forward.2} parent=0 // loop_footer
    %s16 = sadd.s32 1, %s12
  $region7: #{cnn_block_forward.2} parent=0 // loop_footer_branch
    %11 = sbr.rel target = $region3
  $region8: #{cnn_block_forward.2} parent=0 // loop_exit
    _

</llo_original>
